<compile_context>
chip_gen: v7x
topology: tpu7x:2x2x1
jax: 0.10.0
libtpu: 0.0.40
codegen_flags: <defaults>
</compile_context>

<pallas_src>
import functools

import jax
import jax.numpy as jnp
from jax import lax
from jax.experimental import pallas as pl
from jax.experimental.pallas import tpu as pltpu


def _conv_bn_relu_kernel(xm_ref, xh_ref, w_ref, b_ref, g_ref, bt_ref,
                         o_ref, sum_ref, ssq_ref, *,
                         eps, inv_count, bh, w_out, kh_sz, kw_sz, ph):
    """One (pass, image, row-tile) grid step.

    xm_ref : (1, BH, Wp, Cp)        main padded-input rows of this tile
    xh_ref : (1, halo_bh, Wp, Cp)   rows just below the tile (first 2*ph rows used)
    w_ref  : (KH*KW*Cp, Cp)         tap-folded conv weights
    b/g/bt : (1, Cp)                conv bias, BN gamma, BN beta
    o_ref  : (1, BH, W, Cp)         output tile (written only in pass 1)
    sum_ref/ssq_ref : (1, Cp)       persistent per-channel sum / sum-of-squares
    """
    p = pl.program_id(0)
    n = pl.program_id(1)
    i = pl.program_id(2)

    # Halo-extended tile: padded input rows [i*BH, i*BH + BH + 2*ph).
    if ph > 0:
        x_full = jnp.concatenate([xm_ref[0], xh_ref[0, :2 * ph]], axis=0)
    else:
        x_full = xm_ref[0]

    # In-VMEM im2col: fold all KH*KW taps into the lane axis -> one MXU contraction.
    cols = jnp.concatenate(
        [x_full[kh:kh + bh, kw:kw + w_out, :]
         for kh in range(kh_sz) for kw in range(kw_sz)],
        axis=-1)
    rows = bh * w_out
    cols = cols.reshape(rows, cols.shape[-1])

    conv = jnp.dot(cols, w_ref[...], preferred_element_type=jnp.float32)
    conv = conv + b_ref[...]                                   # (rows, Cp) f32

    @pl.when((p == 0) & (n == 0) & (i == 0))
    def _init_stats():
        sum_ref[...] = jnp.zeros_like(sum_ref)
        ssq_ref[...] = jnp.zeros_like(ssq_ref)

    @pl.when(p == 0)
    def _accumulate_stats():
        sum_ref[...] += jnp.sum(conv, axis=0, keepdims=True)
        ssq_ref[...] += jnp.sum(conv * conv, axis=0, keepdims=True)

    @pl.when(p == 1)
    def _normalize_store():
        mean = sum_ref[...] * inv_count
        var = jnp.maximum(ssq_ref[...] * inv_count - mean * mean, 0.0)
        scale = lax.rsqrt(var + eps) * g_ref[...]
        shift = bt_ref[...] - mean * scale
        y = jnp.maximum(conv * scale + shift, 0.0)
        o_ref[...] = y.reshape(o_ref.shape).astype(o_ref.dtype)


def _pick_block_h(h, w, ph, row_target=512):
    """Largest divisor of H with BH*W <= row_target, preferring BH % (2*ph) == 0."""
    divs = [d for d in range(1, h + 1) if h % d == 0]
    fit = [d for d in divs if d * w <= row_target] or [1]
    if ph > 0:
        pref = [d for d in fit if d % (2 * ph) == 0]
        if pref:
            return max(pref)
    return max(fit)


def net2net_conv_identity_forward(x_nchw, w_oihw, bias, gamma, beta, *,
                                  eps=1e-5, compute_dtype=jnp.float32):
    """x_nchw: (N, C, H, W); w_oihw: (C, C, KH, KW); returns (N, C, H, W) float32."""
    N, C, H, W = x_nchw.shape
    Cout, Cin, KH, KW = w_oihw.shape
    assert Cout == C and Cin == C
    ph, pw = (KH - 1) // 2, (KW - 1) // 2

    LANE = 128
    Cp = ((C + LANE - 1) // LANE) * LANE          # lane-dense channel count
    BH = _pick_block_h(H, W, ph)                  # image rows per tile (divides H)
    T = H // BH
    Wp = W + 2 * pw

    # Layout plumbing: NCHW -> zero-padded NHWC with Cp lanes (one pass over x).
    # TODO(synk): accept NHWC input / fuse the final transpose into the consumer.
    x = jnp.transpose(x_nchw, (0, 2, 3, 1))
    xp = jnp.pad(x, ((0, 0), (ph, ph), (pw, pw), (0, Cp - C))).astype(compute_dtype)

    # Tap-folded weights: (KH, KW, Cin, Cout) -> (KH*KW*Cp, Cp), matching im2col order.
    wk = jnp.transpose(w_oihw, (2, 3, 1, 0))
    wk = jnp.pad(wk, ((0, 0), (0, 0), (0, Cp - C), (0, Cp - C)))
    wf = wk.reshape(KH * KW * Cp, Cp).astype(compute_dtype)

    b_p = jnp.pad(bias, (0, Cp - C)).reshape(1, Cp).astype(jnp.float32)
    g_p = jnp.pad(gamma, (0, Cp - C)).reshape(1, Cp).astype(jnp.float32)
    bt_p = jnp.pad(beta, (0, Cp - C)).reshape(1, Cp).astype(jnp.float32)

    # Halo in_spec: padded rows [(i+1)*BH, (i+1)*BH + 2*ph) of the same array.
    if ph == 0:
        halo_bh = 1
        halo_map = lambda p, n, i: (n, 0, 0, 0)
    elif BH % (2 * ph) == 0:
        halo_bh = 2 * ph
        step = BH // (2 * ph)
        halo_map = lambda p, n, i: (n, (i + 1) * step, 0, 0)
    else:  # fallback: fetch one extra full block, use only its first 2*ph rows
        halo_bh = BH
        halo_map = lambda p, n, i: (n, i + 1, 0, 0)

    kernel = functools.partial(
        _conv_bn_relu_kernel, eps=eps, inv_count=1.0 / float(N * H * W),
        bh=BH, w_out=W, kh_sz=KH, kw_sz=KW, ph=ph)

    out_p = pl.pallas_call(
        kernel,
        out_shape=jax.ShapeDtypeStruct((N, H, W, Cp), jnp.float32),
        grid=(2, N, T),                        # (pass, image, row-tile); pass 0 = stats
        in_specs=[
            pl.BlockSpec((1, BH, Wp, Cp), lambda p, n, i: (n, i, 0, 0)),
            pl.BlockSpec((1, halo_bh, Wp, Cp), halo_map),
            pl.BlockSpec((KH * KW * Cp, Cp), lambda p, n, i: (0, 0)),
            pl.BlockSpec((1, Cp), lambda p, n, i: (0, 0)),
            pl.BlockSpec((1, Cp), lambda p, n, i: (0, 0)),
            pl.BlockSpec((1, Cp), lambda p, n, i: (0, 0)),
        ],
        # Pass 0 never writes the output; pin its block index at (0, 0) so no garbage
        # writeback happens (the block index only changes once pass 1 starts storing).
        out_specs=pl.BlockSpec((1, BH, W, Cp), lambda p, n, i: (n * p, i * p, 0, 0)),
        scratch_shapes=[pltpu.VMEM((1, Cp), jnp.float32),
                        pltpu.VMEM((1, Cp), jnp.float32)],
        compiler_params=pltpu.CompilerParams(
            # BN stats accumulate across (n, i) in pass 0 and are read in pass 1, so all
            # axes are sequential. TODO(synk): per-core partial stats + combine would
            # allow the row axis to be "parallel" across v7x's 2 TensorCores.
            dimension_semantics=("arbitrary", "arbitrary", "arbitrary"),
            vmem_limit_bytes=48 * 1024 * 1024),
    )(xp, xp, wf, b_p, g_p, bt_p)

    return jnp.transpose(out_p[:, :, :, :C], (0, 3, 1, 2))   # back to NCHW


if __name__ == "__main__":
    key = jax.random.PRNGKey(0)
    N, C, H, W = 2, 4, 16, 16
    KH, KW = 3, 3

    x = jax.random.normal(key, (N, C, H, W), dtype=jnp.float32)

    # Net2Net identity initialization of the conv (OIHW): center tap = I, bias = 0.
    w = jnp.zeros((C, C, KH, KW), jnp.float32)
    w = w.at[jnp.arange(C), jnp.arange(C), (KH - 1) // 2, (KW - 1) // 2].set(1.0)
    bias = jnp.zeros((C,), jnp.float32)
    gamma = jnp.ones((C,), jnp.float32)
    beta = jnp.zeros((C,), jnp.float32)
    # TODO(synk): running_mean/running_var (momentum=1) bookkeeping is training-state
    # side-effect only; it does not affect the forward output and is not modeled.

    out = net2net_conv_identity_forward(x, w, bias, gamma, beta)
    out = jax.block_until_ready(out)

    # Pure-JAX reference.
    conv_ref = lax.conv_general_dilated(
        x, w, window_strides=(1, 1),
        padding=(((KH - 1) // 2,) * 2, ((KW - 1) // 2,) * 2),
        dimension_numbers=("NCHW", "OIHW", "NCHW"),
    ) + bias[None, :, None, None]
    mu = jnp.mean(conv_ref, axis=(0, 2, 3), keepdims=True)
    var = jnp.mean((conv_ref - mu) ** 2, axis=(0, 2, 3), keepdims=True)
    ref = jnp.maximum(
        (conv_ref - mu) / jnp.sqrt(var + 1e-5) * gamma[None, :, None, None]
        + beta[None, :, None, None],
        0.0,
    )

    assert out.shape == (N, C, H, W)
    max_err = float(jnp.max(jnp.abs(out - ref)))
    assert jnp.allclose(out, ref, rtol=1e-4, atol=1e-5), max_err
    print("KERNEL_OK")
</pallas_src>

<mosaic_0001>
module attributes {stable_mosaic.version = 11 : i64} {
  func.func @_conv_bn_relu_kernel(%arg0: i32, %arg1: i32, %arg2: i32, %arg3: memref<1x16x18x128xf32, #tpu.memory_space<vmem>>, %arg4: memref<1x2x18x128xf32, #tpu.memory_space<vmem>>, %arg5: memref<1152x128xf32, #tpu.memory_space<vmem>>, %arg6: memref<1x128xf32, #tpu.memory_space<vmem>>, %arg7: memref<1x128xf32, #tpu.memory_space<vmem>>, %arg8: memref<1x128xf32, #tpu.memory_space<vmem>>, %arg9: memref<1x16x16x128xf32, #tpu.memory_space<vmem>>, %arg10: memref<1x128xf32, #tpu.memory_space<vmem>>, %arg11: memref<1x128xf32, #tpu.memory_space<vmem>>) attributes {dimension_semantics = [#tpu.dimension_semantics<arbitrary>, #tpu.dimension_semantics<arbitrary>, #tpu.dimension_semantics<arbitrary>], iteration_bounds = array<i64: 2, 2, 1>, scalar_prefetch = 0 : i64, scratch_operands = 2 : i64, tpu.core_type = #tpu.core_type<tc>, window_params = [{transform_indices = @transform_0, window_bounds = array<i64: 1, 16, 18, 128>}, {transform_indices = @transform_1, window_bounds = array<i64: 1, 2, 18, 128>}, {pipeline_mode = #tpu.pipeline_mode<synchronous>, transform_indices = @transform_2, window_bounds = array<i64: 1152, 128>}, {pipeline_mode = #tpu.pipeline_mode<synchronous>, transform_indices = @transform_3, window_bounds = array<i64: 1, 128>}, {pipeline_mode = #tpu.pipeline_mode<synchronous>, transform_indices = @transform_4, window_bounds = array<i64: 1, 128>}, {pipeline_mode = #tpu.pipeline_mode<synchronous>, transform_indices = @transform_5, window_bounds = array<i64: 1, 128>}, {transform_indices = @transform_6, window_bounds = array<i64: 1, 16, 16, 128>}]} {
    %c0 = arith.constant 0 : index
    %c0_0 = arith.constant 0 : index
    %c0_1 = arith.constant 0 : index
    %c0_2 = arith.constant 0 : index
    %0 = vector.load %arg3[%c0, %c0_0, %c0_1, %c0_2] : memref<1x16x18x128xf32, #tpu.memory_space<vmem>>, vector<1x16x18x128xf32>
    %1 = vector.shape_cast %0 : vector<1x16x18x128xf32> to vector<16x18x128xf32>
    %c0_3 = arith.constant 0 : index
    %c0_4 = arith.constant 0 : index
    %c0_5 = arith.constant 0 : index
    %c0_6 = arith.constant 0 : index
    %2 = vector.load %arg4[%c0_3, %c0_4, %c0_5, %c0_6] : memref<1x2x18x128xf32, #tpu.memory_space<vmem>>, vector<1x2x18x128xf32>
    %3 = vector.shape_cast %2 : vector<1x2x18x128xf32> to vector<2x18x128xf32>
    %4 = tpu.concatenate %1, %3 in 0 : vector<16x18x128xf32>, vector<2x18x128xf32> -> vector<18x18x128xf32>
    %5 = vector.extract_strided_slice %4 {offsets = [0, 0, 0], sizes = [16, 16, 128], strides = [1, 1, 1]} : vector<18x18x128xf32> to vector<16x16x128xf32>
    %6 = vector.extract_strided_slice %4 {offsets = [0, 1, 0], sizes = [16, 16, 128], strides = [1, 1, 1]} : vector<18x18x128xf32> to vector<16x16x128xf32>
    %7 = vector.extract_strided_slice %4 {offsets = [0, 2, 0], sizes = [16, 16, 128], strides = [1, 1, 1]} : vector<18x18x128xf32> to vector<16x16x128xf32>
    %8 = vector.extract_strided_slice %4 {offsets = [1, 0, 0], sizes = [16, 16, 128], strides = [1, 1, 1]} : vector<18x18x128xf32> to vector<16x16x128xf32>
    %9 = vector.extract_strided_slice %4 {offsets = [1, 1, 0], sizes = [16, 16, 128], strides = [1, 1, 1]} : vector<18x18x128xf32> to vector<16x16x128xf32>
    %10 = vector.extract_strided_slice %4 {offsets = [1, 2, 0], sizes = [16, 16, 128], strides = [1, 1, 1]} : vector<18x18x128xf32> to vector<16x16x128xf32>
    %11 = vector.extract_strided_slice %4 {offsets = [2, 0, 0], sizes = [16, 16, 128], strides = [1, 1, 1]} : vector<18x18x128xf32> to vector<16x16x128xf32>
    %12 = vector.extract_strided_slice %4 {offsets = [2, 1, 0], sizes = [16, 16, 128], strides = [1, 1, 1]} : vector<18x18x128xf32> to vector<16x16x128xf32>
    %13 = vector.extract_strided_slice %4 {offsets = [2, 2, 0], sizes = [16, 16, 128], strides = [1, 1, 1]} : vector<18x18x128xf32> to vector<16x16x128xf32>
    %14 = tpu.concatenate %5, %6, %7, %8, %9, %10, %11, %12, %13 in 2 : vector<16x16x128xf32>, vector<16x16x128xf32>, vector<16x16x128xf32>, vector<16x16x128xf32>, vector<16x16x128xf32>, vector<16x16x128xf32>, vector<16x16x128xf32>, vector<16x16x128xf32>, vector<16x16x128xf32> -> vector<16x16x1152xf32>
    %15 = vector.shape_cast %14 : vector<16x16x1152xf32> to vector<256x1152xf32>
    %c0_7 = arith.constant 0 : index
    %c0_8 = arith.constant 0 : index
    %16 = vector.load %arg5[%c0_7, %c0_8] : memref<1152x128xf32, #tpu.memory_space<vmem>>, vector<1152x128xf32>
    %cst = arith.constant dense<0.000000e+00> : vector<256x128xf32>
    %17 = tpu.matmul %15, %16, %cst {dimension_numbers = #tpu.dot_dimension_numbers<[1], [0], [0], [1], [0, 0, 1, 1], [], []>} : vector<256x1152xf32>, vector<1152x128xf32>, vector<256x128xf32> -> vector<256x128xf32>
    %c0_9 = arith.constant 0 : index
    %c0_10 = arith.constant 0 : index
    %18 = vector.load %arg6[%c0_9, %c0_10] : memref<1x128xf32, #tpu.memory_space<vmem>>, vector<1x128xf32>
    %19 = vector.broadcast %18 : vector<1x128xf32> to vector<256x128xf32>
    %20 = arith.addf %17, %19 : vector<256x128xf32>
    %c0_i32 = arith.constant 0 : i32
    %21 = arith.cmpi eq, %arg0, %c0_i32 : i32
    %c0_i32_11 = arith.constant 0 : i32
    %22 = arith.cmpi eq, %arg1, %c0_i32_11 : i32
    %23 = arith.andi %21, %22 : i1
    %c0_i32_12 = arith.constant 0 : i32
    %24 = arith.cmpi eq, %arg2, %c0_i32_12 : i32
    %25 = arith.andi %23, %24 : i1
    %26 = arith.extui %25 : i1 to i32
    %c0_i32_13 = arith.constant 0 : i32
    %27 = arith.cmpi ne, %26, %c0_i32_13 : i32
    scf.if %27 {
      %cst_17 = arith.constant 0.000000e+00 : f32
      %34 = vector.broadcast %cst_17 : f32 to vector<1x128xf32>
      %c0_18 = arith.constant 0 : index
      %c0_19 = arith.constant 0 : index
      %35 = vector.load %arg10[%c0_18, %c0_19] : memref<1x128xf32, #tpu.memory_space<vmem>>, vector<1x128xf32>
      tpu.vector_store %arg10[%c0_18, %c0_19], %34 {strides = array<i32>} : memref<1x128xf32, #tpu.memory_space<vmem>>, vector<1x128xf32>,
      %cst_20 = arith.constant 0.000000e+00 : f32
      %36 = vector.broadcast %cst_20 : f32 to vector<1x128xf32>
      %c0_21 = arith.constant 0 : index
      %c0_22 = arith.constant 0 : index
      %37 = vector.load %arg11[%c0_21, %c0_22] : memref<1x128xf32, #tpu.memory_space<vmem>>, vector<1x128xf32>
      tpu.vector_store %arg11[%c0_21, %c0_22], %36 {strides = array<i32>} : memref<1x128xf32, #tpu.memory_space<vmem>>, vector<1x128xf32>,
    } else {
    }
    %c0_i32_14 = arith.constant 0 : i32
    %28 = arith.cmpi eq, %arg0, %c0_i32_14 : i32
    %29 = arith.extui %28 : i1 to i32
    %c0_i32_15 = arith.constant 0 : i32
    %30 = arith.cmpi ne, %29, %c0_i32_15 : i32
    scf.if %30 {
      %c0_17 = arith.constant 0 : index
      %c0_18 = arith.constant 0 : index
      %34 = vector.load %arg10[%c0_17, %c0_18] : memref<1x128xf32, #tpu.memory_space<vmem>>, vector<1x128xf32>
      %cst_19 = arith.constant dense<0.000000e+00> : vector<128xf32>
      %35 = vector.multi_reduction <add>, %20, %cst_19 [0] : vector<256x128xf32> to vector<128xf32>
      %36 = vector.shape_cast %35 : vector<128xf32> to vector<1x128xf32>
      %37 = arith.addf %34, %36 : vector<1x128xf32>
      %c0_20 = arith.constant 0 : index
      %c0_21 = arith.constant 0 : index
      %38 = vector.load %arg10[%c0_20, %c0_21] : memref<1x128xf32, #tpu.memory_space<vmem>>, vector<1x128xf32>
      tpu.vector_store %arg10[%c0_20, %c0_21], %37 {strides = array<i32>} : memref<1x128xf32, #tpu.memory_space<vmem>>, vector<1x128xf32>,
      %c0_22 = arith.constant 0 : index
      %c0_23 = arith.constant 0 : index
      %39 = vector.load %arg11[%c0_22, %c0_23] : memref<1x128xf32, #tpu.memory_space<vmem>>, vector<1x128xf32>
      %40 = arith.mulf %20, %20 : vector<256x128xf32>
      %cst_24 = arith.constant dense<0.000000e+00> : vector<128xf32>
      %41 = vector.multi_reduction <add>, %40, %cst_24 [0] : vector<256x128xf32> to vector<128xf32>
      %42 = vector.shape_cast %41 : vector<128xf32> to vector<1x128xf32>
      %43 = arith.addf %39, %42 : vector<1x128xf32>
      %c0_25 = arith.constant 0 : index
      %c0_26 = arith.constant 0 : index
      %44 = vector.load %arg11[%c0_25, %c0_26] : memref<1x128xf32, #tpu.memory_space<vmem>>, vector<1x128xf32>
      tpu.vector_store %arg11[%c0_25, %c0_26], %43 {strides = array<i32>} : memref<1x128xf32, #tpu.memory_space<vmem>>, vector<1x128xf32>,
    } else {
    }
    %c1_i32 = arith.constant 1 : i32
    %31 = arith.cmpi eq, %arg0, %c1_i32 : i32
    %32 = arith.extui %31 : i1 to i32
    %c0_i32_16 = arith.constant 0 : i32
    %33 = arith.cmpi ne, %32, %c0_i32_16 : i32
    scf.if %33 {
      %c0_17 = arith.constant 0 : index
      %c0_18 = arith.constant 0 : index
      %34 = vector.load %arg10[%c0_17, %c0_18] : memref<1x128xf32, #tpu.memory_space<vmem>>, vector<1x128xf32>
      %cst_19 = arith.constant 0.001953125 : f32
      %35 = vector.broadcast %cst_19 : f32 to vector<1x128xf32>
      %36 = arith.mulf %34, %35 : vector<1x128xf32>
      %c0_20 = arith.constant 0 : index
      %c0_21 = arith.constant 0 : index
      %37 = vector.load %arg11[%c0_20, %c0_21] : memref<1x128xf32, #tpu.memory_space<vmem>>, vector<1x128xf32>
      %cst_22 = arith.constant 0.001953125 : f32
      %38 = vector.broadcast %cst_22 : f32 to vector<1x128xf32>
      %39 = arith.mulf %37, %38 : vector<1x128xf32>
      %40 = arith.mulf %36, %36 : vector<1x128xf32>
      %41 = arith.subf %39, %40 : vector<1x128xf32>
      %cst_23 = arith.constant 0.000000e+00 : f32
      %42 = vector.broadcast %cst_23 : f32 to vector<1x128xf32>
      %43 = arith.maximumf %41, %42 : vector<1x128xf32>
      %cst_24 = arith.constant 9.99999974E-6 : f32
      %44 = vector.broadcast %cst_24 : f32 to vector<1x128xf32>
      %45 = arith.addf %43, %44 : vector<1x128xf32>
      %46 = math.rsqrt %45 : vector<1x128xf32>
      %c0_25 = arith.constant 0 : index
      %c0_26 = arith.constant 0 : index
      %47 = vector.load %arg7[%c0_25, %c0_26] : memref<1x128xf32, #tpu.memory_space<vmem>>, vector<1x128xf32>
      %48 = arith.mulf %46, %47 : vector<1x128xf32>
      %c0_27 = arith.constant 0 : index
      %c0_28 = arith.constant 0 : index
      %49 = vector.load %arg8[%c0_27, %c0_28] : memref<1x128xf32, #tpu.memory_space<vmem>>, vector<1x128xf32>
      %50 = arith.mulf %36, %48 : vector<1x128xf32>
      %51 = arith.subf %49, %50 : vector<1x128xf32>
      %52 = vector.broadcast %48 : vector<1x128xf32> to vector<256x128xf32>
      %53 = arith.mulf %20, %52 : vector<256x128xf32>
      %54 = vector.broadcast %51 : vector<1x128xf32> to vector<256x128xf32>
      %55 = arith.addf %53, %54 : vector<256x128xf32>
      %cst_29 = arith.constant 0.000000e+00 : f32
      %56 = vector.broadcast %cst_29 : f32 to vector<256x128xf32>
      %57 = arith.maximumf %55, %56 : vector<256x128xf32>
      %58 = vector.shape_cast %57 : vector<256x128xf32> to vector<1x16x16x128xf32>
      %c0_30 = arith.constant 0 : index
      %c0_31 = arith.constant 0 : index
      %c0_32 = arith.constant 0 : index
      %c0_33 = arith.constant 0 : index
      %59 = vector.load %arg9[%c0_30, %c0_31, %c0_32, %c0_33] : memref<1x16x16x128xf32, #tpu.memory_space<vmem>>, vector<1x16x16x128xf32>
      tpu.vector_store %arg9[%c0_30, %c0_31, %c0_32, %c0_33], %58 {strides = array<i32>} : memref<1x16x16x128xf32, #tpu.memory_space<vmem>>, vector<1x16x16x128xf32>,
    } else {
    }
    return
  }
  func.func @transform_0(%arg0: i32, %arg1: i32, %arg2: i32) -> (i32, i32, i32, i32) {
    %c0_i32 = arith.constant 0 : i32
    %c0_i32_0 = arith.constant 0 : i32
    %c0_i32_1 = arith.constant 0 : i32
    return %arg1, %arg2, %c0_i32, %c0_i32_0 : i32, i32, i32, i32
  }
  func.func @transform_1(%arg0: i32, %arg1: i32, %arg2: i32) -> (i32, i32, i32, i32) {
    %c1_i32 = arith.constant 1 : i32
    %0 = arith.addi %arg2, %c1_i32 : i32
    %c8_i32 = arith.constant 8 : i32
    %1 = arith.muli %0, %c8_i32 : i32
    %c0_i32 = arith.constant 0 : i32
    %c0_i32_0 = arith.constant 0 : i32
    %c0_i32_1 = arith.constant 0 : i32
    return %arg1, %1, %c0_i32, %c0_i32_0 : i32, i32, i32, i32
  }
  func.func @transform_2(%arg0: i32, %arg1: i32, %arg2: i32) -> (i32, i32) {
    %c0_i32 = arith.constant 0 : i32
    %c0_i32_0 = arith.constant 0 : i32
    %c0_i32_1 = arith.constant 0 : i32
    return %c0_i32, %c0_i32_0 : i32, i32
  }
  func.func @transform_3(%arg0: i32, %arg1: i32, %arg2: i32) -> (i32, i32) {
    %c0_i32 = arith.constant 0 : i32
    %c0_i32_0 = arith.constant 0 : i32
    %c0_i32_1 = arith.constant 0 : i32
    return %c0_i32, %c0_i32_0 : i32, i32
  }
  func.func @transform_4(%arg0: i32, %arg1: i32, %arg2: i32) -> (i32, i32) {
    %c0_i32 = arith.constant 0 : i32
    %c0_i32_0 = arith.constant 0 : i32
    %c0_i32_1 = arith.constant 0 : i32
    return %c0_i32, %c0_i32_0 : i32, i32
  }
  func.func @transform_5(%arg0: i32, %arg1: i32, %arg2: i32) -> (i32, i32) {
    %c0_i32 = arith.constant 0 : i32
    %c0_i32_0 = arith.constant 0 : i32
    %c0_i32_1 = arith.constant 0 : i32
    return %c0_i32, %c0_i32_0 : i32, i32
  }
  func.func @transform_6(%arg0: i32, %arg1: i32, %arg2: i32) -> (i32, i32, i32, i32) {
    %0 = arith.muli %arg1, %arg0 : i32
    %1 = arith.muli %arg2, %arg0 : i32
    %c0_i32 = arith.constant 0 : i32
    %c0_i32_0 = arith.constant 0 : i32
    %c0_i32_1 = arith.constant 0 : i32
    return %0, %1, %c0_i32, %c0_i32_0 : i32, i32, i32, i32
  }
}

</mosaic_0001>

<llo_original>
// kernel: tpu_custom_call.1
$region0: #{tpu_custom_call.1}
  #allocation0 [shape = 'u32[]', space=smem, size = 0x4, offset = 0x4, fixed_abs, tag = 'smem constant byte address 0x4 - core index']
  #allocation1 [shape = 'u32[144,128]{1,0:T(1,128)}', space=vmem, size = 0x12000, scoped, tag = 'internal scratch']
  #allocation2 [shape = 'f32[1,128]{1,0:T(1,128)}', space=vmem, size = 0x200, scoped, tag = 'scratch operand']
  #allocation3 [shape = 'f32[1,128]{1,0:T(1,128)}', space=vmem, size = 0x200, scoped, tag = 'scratch operand']
  %s0 = inlined_call_operand.vmem [shape: f32[2,18,18,128], index: 0, kind: input, shape index: {}]
  %s1 = inlined_call_operand.vmem [shape: f32[2,18,18,128], index: 1, kind: input, shape index: {}]
  %s2 = inlined_call_operand.vmem [shape: f32[1152,128], index: 2, kind: input, shape index: {}]
  %s3 = inlined_call_operand.vmem [shape: f32[1,128], index: 3, kind: input, shape index: {}]
  %s4 = inlined_call_operand.vmem [shape: f32[1,128], index: 4, kind: input, shape index: {}]
  %s5 = inlined_call_operand.vmem [shape: f32[1,128], index: 5, kind: input, shape index: {}]
  %s6 = inlined_call_operand.hbm [shape: f32[2,16,16,128], index: 6, kind: output, shape index: {}]
  %s7 = sld [smem:[#allocation0]]
  $region69: #{tpu_custom_call.1} parent=0
    _
  %s9 = ssub.s32 1, %s7
  %s10 = scalar_select 0, %s9, %s7
  $region1: #{tpu_custom_call.1} parent=0
    #allocation4 [shape = 'u8[262144]{0}', space=vmem, size = 0x40000, scoped, tag = 'output window, operand 0']
    #allocation5 [shape = 's32[2]{0}', space=sflag, size = 0x8, scoped, tag = 'scoped memory for tpu_custom_call.1']
    %11 = vsyncpa [#allocation5], 0
    %s12 = scalar_lea.sflag [#allocation5], 1
    %13 = vsyncpa %s12, 0
    loop: start=0, step=1, limit=6
    $region2: #{tpu_custom_call.1} parent=1 // loop_pre_header
      _
    $region3: #{tpu_custom_call.1} parent=1 // loop_header
      %s15 = sphi 0, %s19
      %p16 = scmp.ge.s32.totalorder %s15, 6
      %s22 = sphi 0, %s41
      %s23 = sphi 0, %s37
      %s24 = sphi 0, %s33
      %s25 = sphi 0, %s22
      %s26 = sphi 0, %s23
      %s27 = sphi 0, %s24
      %s28 = sphi 0, %s25
      %s29 = sphi 0, %s26
      %s30 = sphi 0, %s27
      %s46 = sphi 0, %s48
      %s49 = sphi 0, %s46
      %s50 = sphi 0, %s49
      %s66 = sphi 0, %s50
      %s78 = sphi 0, %s80
      %s81 = sphi 0, %s78
      %s82 = sphi 0, %s81
      %s98 = sphi 0, %s82
      %s102 = sphi 0, %s102
      %s104 = sphi 0, %s102
      %s105 = sphi 0, %s104
      %s119 = sphi 0, %s105
      %s123 = sphi 0, %s123
      %s125 = sphi 0, %s123
      %s126 = sphi 0, %s125
      %s140 = sphi 0, %s126
      %s144 = sphi 0, %s144
      %s146 = sphi 0, %s144
      %s147 = sphi 0, %s146
      %s161 = sphi 0, %s147
      %s165 = sphi 0, %s165
      %s167 = sphi 0, %s165
      %s168 = sphi 0, %s167
      %s182 = sphi 0, %s168
      %s194 = sphi 0, %s196
      %s197 = sphi 0, %s194
      %s198 = sphi 0, %s197
      %s214 = sphi 0, %s198
    $region4: #{tpu_custom_call.1} parent=1 // loop_header_branch
      %18 = sbr.rel (%p16) target = $region8
    $region5: #{tpu_custom_call.1} parent=1 // loop_body
      %s20 = ssub.s32 %s15, 1
      %s21 = ssub.s32 %s15, 2
      %s31 = sadd.s32 1, %s24
      %p32 = scmp.ge.s32.totalorder %s31, 1
      %s33 = scalar_select %p32, 0, %s31
      %s34 = sadd.s32 1, %s23
      %s35 = scalar_select %p32, %s34, %s23
      %p36 = scmp.ge.s32.totalorder %s35, 2
      %s37 = scalar_select %p36, 0, %s35
      %s38 = sadd.s32 1, %s22
      %s39 = scalar_select %p36, %s38, %s22
      %p40 = scmp.ge.s32.totalorder %s39, 2
      %s41 = scalar_select %p40, 0, %s39
      %s42 = ssub.s32 %s23, %s37
      %s43 = ssub.s32 %s24, %s33
      %s44 = sor.u32 %s42, %s43
      %p45 = scmp.eq.s32.totalorder %s44, 0
      %s47 = sadd.s32 %s46, 1
      %s48 = scalar_select %p45, %s46, %s47
      %p51 = pneg %p45
      %p52 = scmp.eq.s32.totalorder %s15, 3
      %p53 = por %p51, %p52
      %p54 = scmp.ne.s32.totalorder %s46, %s49
      %p55 = scmp.eq.s32.totalorder %s15, 0
      %p56 = por %p54, %p55
      %p57 = scmp.ne.s32.totalorder %s46, %s49
      %p58 = scmp.eq.s32.totalorder %s20, 3
      %p59 = por %p57, %p58
      %p60 = scmp.ne.s32.totalorder %s49, %s50
      %p61 = scmp.eq.s32.totalorder %s20, 0
      %p62 = por %p60, %p61
      %p63 = scmp.ne.s32.totalorder %s49, %s50
      %p64 = scmp.eq.s32.totalorder %s21, 3
      %p65 = por %p63, %p64
      %p67 = scmp.ne.s32.totalorder %s50, %s66
      %p68 = scmp.eq.s32.totalorder %s21, 0
      %p69 = por %p67, %p68
      %s70 = sadd.s32 %s24, 1
      %s71 = smul.u32 %s70, 8
      %s72 = sadd.s32 %s33, 1
      %s73 = smul.u32 %s72, 8
      %s74 = ssub.s32 %s23, %s37
      %s75 = ssub.s32 %s71, %s73
      %s76 = sor.u32 %s74, %s75
      %p77 = scmp.eq.s32.totalorder %s76, 0
      %s79 = sadd.s32 %s78, 1
      %s80 = scalar_select %p77, %s78, %s79
      %p83 = pneg %p77
      %p84 = scmp.eq.s32.totalorder %s15, 3
      %p85 = por %p83, %p84
      %p86 = scmp.ne.s32.totalorder %s78, %s81
      %p87 = scmp.eq.s32.totalorder %s15, 0
      %p88 = por %p86, %p87
      %p89 = scmp.ne.s32.totalorder %s78, %s81
      %p90 = scmp.eq.s32.totalorder %s20, 3
      %p91 = por %p89, %p90
      %p92 = scmp.ne.s32.totalorder %s81, %s82
      %p93 = scmp.eq.s32.totalorder %s20, 0
      %p94 = por %p92, %p93
      %p95 = scmp.ne.s32.totalorder %s81, %s82
      %p96 = scmp.eq.s32.totalorder %s21, 3
      %p97 = por %p95, %p96
      %p99 = scmp.ne.s32.totalorder %s82, %s98
      %p100 = scmp.eq.s32.totalorder %s21, 0
      %p101 = por %p99, %p100
      %s103 = sadd.s32 %s102, 1
      %p106 = scmp.eq.s32.totalorder %s15, 3
      %p107 = scmp.ne.s32.totalorder %s102, %s104
      %p108 = scmp.eq.s32.totalorder %s15, 0
      %p109 = por %p107, %p108
      %p110 = scmp.ne.s32.totalorder %s102, %s104
      %p111 = scmp.eq.s32.totalorder %s20, 3
      %p112 = por %p110, %p111
      %p113 = scmp.ne.s32.totalorder %s104, %s105
      %p114 = scmp.eq.s32.totalorder %s20, 0
      %p115 = por %p113, %p114
      %p116 = scmp.ne.s32.totalorder %s104, %s105
      %p117 = scmp.eq.s32.totalorder %s21, 3
      %p118 = por %p116, %p117
      %p120 = scmp.ne.s32.totalorder %s105, %s119
      %p121 = scmp.eq.s32.totalorder %s21, 0
      %p122 = por %p120, %p121
      %s124 = sadd.s32 %s123, 1
      %p127 = scmp.eq.s32.totalorder %s15, 3
      %p128 = scmp.ne.s32.totalorder %s123, %s125
      %p129 = scmp.eq.s32.totalorder %s15, 0
      %p130 = por %p128, %p129
      %p131 = scmp.ne.s32.totalorder %s123, %s125
      %p132 = scmp.eq.s32.totalorder %s20, 3
      %p133 = por %p131, %p132
      %p134 = scmp.ne.s32.totalorder %s125, %s126
      %p135 = scmp.eq.s32.totalorder %s20, 0
      %p136 = por %p134, %p135
      %p137 = scmp.ne.s32.totalorder %s125, %s126
      %p138 = scmp.eq.s32.totalorder %s21, 3
      %p139 = por %p137, %p138
      %p141 = scmp.ne.s32.totalorder %s126, %s140
      %p142 = scmp.eq.s32.totalorder %s21, 0
      %p143 = por %p141, %p142
      %s145 = sadd.s32 %s144, 1
      %p148 = scmp.eq.s32.totalorder %s15, 3
      %p149 = scmp.ne.s32.totalorder %s144, %s146
      %p150 = scmp.eq.s32.totalorder %s15, 0
      %p151 = por %p149, %p150
      %p152 = scmp.ne.s32.totalorder %s144, %s146
      %p153 = scmp.eq.s32.totalorder %s20, 3
      %p154 = por %p152, %p153
      %p155 = scmp.ne.s32.totalorder %s146, %s147
      %p156 = scmp.eq.s32.totalorder %s20, 0
      %p157 = por %p155, %p156
      %p158 = scmp.ne.s32.totalorder %s146, %s147
      %p159 = scmp.eq.s32.totalorder %s21, 3
      %p160 = por %p158, %p159
      %p162 = scmp.ne.s32.totalorder %s147, %s161
      %p163 = scmp.eq.s32.totalorder %s21, 0
      %p164 = por %p162, %p163
      %s166 = sadd.s32 %s165, 1
      %p169 = scmp.eq.s32.totalorder %s15, 3
      %p170 = scmp.ne.s32.totalorder %s165, %s167
      %p171 = scmp.eq.s32.totalorder %s15, 0
      %p172 = por %p170, %p171
      %p173 = scmp.ne.s32.totalorder %s165, %s167
      %p174 = scmp.eq.s32.totalorder %s20, 3
      %p175 = por %p173, %p174
      %p176 = scmp.ne.s32.totalorder %s167, %s168
      %p177 = scmp.eq.s32.totalorder %s20, 0
      %p178 = por %p176, %p177
      %p179 = scmp.ne.s32.totalorder %s167, %s168
      %p180 = scmp.eq.s32.totalorder %s21, 3
      %p181 = por %p179, %p180
      %p183 = scmp.ne.s32.totalorder %s168, %s182
      %p184 = scmp.eq.s32.totalorder %s21, 0
      %p185 = por %p183, %p184
      %s186 = smul.u32 %s23, %s22
      %s187 = smul.u32 %s24, %s22
      %s188 = smul.u32 %s37, %s41
      %s189 = smul.u32 %s33, %s41
      %s190 = ssub.s32 %s186, %s188
      %s191 = ssub.s32 %s187, %s189
      %s192 = sor.u32 %s190, %s191
      %p193 = scmp.eq.s32.totalorder %s192, 0
      %s195 = sadd.s32 %s194, 1
      %s196 = scalar_select %p193, %s194, %s195
      %p199 = pneg %p193
      %p200 = scmp.eq.s32.totalorder %s15, 3
      %p201 = por %p199, %p200
      %p202 = scmp.ne.s32.totalorder %s194, %s197
      %p203 = scmp.eq.s32.totalorder %s15, 0
      %p204 = por %p202, %p203
      %p205 = scmp.ne.s32.totalorder %s194, %s197
      %p206 = scmp.eq.s32.totalorder %s20, 3
      %p207 = por %p205, %p206
      %p208 = scmp.ne.s32.totalorder %s197, %s198
      %p209 = scmp.eq.s32.totalorder %s20, 0
      %p210 = por %p208, %p209
      %p211 = scmp.ne.s32.totalorder %s197, %s198
      %p212 = scmp.eq.s32.totalorder %s21, 3
      %p213 = por %p211, %p212
      %p215 = scmp.ne.s32.totalorder %s198, %s214
      %p216 = scmp.eq.s32.totalorder %s21, 0
      %p217 = por %p215, %p216
      %p218 = scmp.le.s32.totalorder 1, %s15
      %p219 = scmp.lt.s32.totalorder %s15, 5
      %p220 = pnand %p218, %p219
      %p221 = pneg %p220
      // Predicated region
      $region9: #{tpu_custom_call.1} parent=5 // pred_check
        _
      $region10: #{tpu_custom_call.1} parent=5 // pred_check_branch
        %223 = sbr.rel (%p220) target = $region12
      $region11: #{tpu_custom_call.1} parent=5 // pred_region
        %s224 = ssub.s32 %s15, 1
        // Predicated region
        $region13: #{tpu_custom_call.1} parent=11 // pred_check
          %p225 = pneg %p115
        $region14: #{tpu_custom_call.1} parent=11 // pred_check_branch
          %227 = sbr.rel (%p225) target = $region16
        $region15: #{tpu_custom_call.1} parent=11 // pred_region
          _
        $region16: #{tpu_custom_call.1} parent=11 // pred_fallthru
          _
        // Predicated region
        $region17: #{tpu_custom_call.1} parent=11 // pred_check
          %p228 = pneg %p136
        $region18: #{tpu_custom_call.1} parent=11 // pred_check_branch
          %230 = sbr.rel (%p228) target = $region20
        $region19: #{tpu_custom_call.1} parent=11 // pred_region
          _
        $region20: #{tpu_custom_call.1} parent=11 // pred_fallthru
          _
        // Predicated region
        $region21: #{tpu_custom_call.1} parent=11 // pred_check
          %p231 = pneg %p157
        $region22: #{tpu_custom_call.1} parent=11 // pred_check_branch
          %233 = sbr.rel (%p231) target = $region24
        $region23: #{tpu_custom_call.1} parent=11 // pred_region
          _
        $region24: #{tpu_custom_call.1} parent=11 // pred_fallthru
          _
        // Predicated region
        $region25: #{tpu_custom_call.1} parent=11 // pred_check
          %p234 = pneg %p178
        $region26: #{tpu_custom_call.1} parent=11 // pred_check_branch
          %236 = sbr.rel (%p234) target = $region28
        $region27: #{tpu_custom_call.1} parent=11 // pred_region
          _
        $region28: #{tpu_custom_call.1} parent=11 // pred_fallthru
          _
      $region12: #{tpu_custom_call.1} parent=5 // pred_fallthru
        _
      %p237 = scmp.lt.s32.totalorder %s15, 4
      // Predicated region
      $region29: #{tpu_custom_call.1} parent=5 // pred_check
        %p238 = pneg %p237
      $region30: #{tpu_custom_call.1} parent=5 // pred_check_branch
        %240 = sbr.rel (%p238) target = $region32
      $region31: #{tpu_custom_call.1} parent=5 // pred_region
        // Predicated region
        $region33: #{tpu_custom_call.1} parent=31 // pred_check
          %p241 = pneg %p56
        $region34: #{tpu_custom_call.1} parent=31 // pred_check_branch
          %243 = sbr.rel (%p241) target = $region36
        $region35: #{tpu_custom_call.1} parent=31 // pred_region
          %s244 = smul.u32 16, %s24
          %s245 = ssub.s32 18, %s244
          %p246 = scmp.lt.s32.totalorder %s245, 16
          %s247 = scalar_select %p246, %s245, 16
          %s248 = smul.u32 128, %s247
          %s249 = smul.u32 %s248, 3
          %p250 = scmp.lt.s32.totalorder %s23, 1
          %s251 = scalar_select %p250, %s23, 1
          %p252 = scmp.lt.s32.totalorder %s244, 17
          %s253 = scalar_select %p252, %s244, 17
          %s254 = smul.addr %s253, 3
          %s255 = smul.addr %s251, 54
          %s256 = sadd.s32 %s254, %s255
          %s257 = smul.addr %s256, 8
          %s258 = scalar_lea.vmem %s0, %s257
          %s259 = smul.u32 16, %s24
          %s260 = ssub.s32 18, %s259
          %p261 = scmp.lt.s32.totalorder %s260, 16
          %s262 = scalar_select %p261, %s260, 16
          %s263 = smul.u32 128, %s262
          %s264 = smul.u32 %s263, 3
        $region36: #{tpu_custom_call.1} parent=31 // pred_fallthru
          _
        // Predicated region
        $region37: #{tpu_custom_call.1} parent=31 // pred_check
          %p265 = pneg %p88
        $region38: #{tpu_custom_call.1} parent=31 // pred_check_branch
          %267 = sbr.rel (%p265) target = $region40
        $region39: #{tpu_custom_call.1} parent=31 // pred_region
          %s268 = sadd.s32 %s24, 1
          %s269 = smul.u32 %s268, 8
          %s270 = smul.u32 2, %s269
          %p271 = scmp.lt.s32.totalorder %s23, 1
          %s272 = scalar_select %p271, %s23, 1
          %p273 = scmp.lt.s32.totalorder %s270, 17
          %s274 = scalar_select %p273, %s270, 17
          %s275 = smul.addr %s274, 3
          %s276 = smul.addr %s272, 54
          %s277 = sadd.s32 %s275, %s276
          %s278 = smul.addr %s277, 8
          %s279 = scalar_lea.vmem %s1, %s278
          %s280 = sadd.s32 %s24, 1
          %s281 = smul.u32 %s280, 8
          %s282 = smul.u32 2, %s281
        $region40: #{tpu_custom_call.1} parent=31 // pred_fallthru
          _
      $region32: #{tpu_custom_call.1} parent=5 // pred_fallthru
        _
      %p283 = scmp.le.s32.totalorder 1, %s15
      %p284 = scmp.lt.s32.totalorder %s15, 5
      %p285 = pnand %p283, %p284
      %p286 = pneg %p285
      // Predicated region
      $region41: #{tpu_custom_call.1} parent=5 // pred_check
        _
      $region42: #{tpu_custom_call.1} parent=5 // pred_check_branch
        %288 = sbr.rel (%p285) target = $region44
      $region43: #{tpu_custom_call.1} parent=5 // pred_region
        %s289 = ssub.s32 %s15, 1
        %s290 = smul.u32 16, %s27
        %s291 = ssub.s32 18, %s290
        %p292 = scmp.lt.s32.totalorder %s291, 16
        %s293 = scalar_select %p292, %s291, 16
        %s294 = smul.u32 128, %s293
        %s295 = smul.u32 %s294, 3
        %p296 = scmp.lt.s32.totalorder %s26, 1
        %s297 = scalar_select %p296, %s26, 1
        %p298 = scmp.lt.s32.totalorder %s290, 17
        %s299 = scalar_select %p298, %s290, 17
        %s300 = smul.addr %s299, 3
        %s301 = smul.addr %s297, 54
        %s302 = sadd.s32 %s300, %s301
        %s303 = smul.addr %s302, 8
        %s304 = scalar_lea.vmem %s0, %s303
        %p305 = pneg %p62
        %p306 = pneg %p59
        %s307 = sadd.s32 %s27, 1
        %s308 = smul.u32 %s307, 8
        %s309 = smul.u32 2, %s308
        %p310 = scmp.lt.s32.totalorder %s26, 1
        %s311 = scalar_select %p310, %s26, 1
        %p312 = scmp.lt.s32.totalorder %s309, 17
        %s313 = scalar_select %p312, %s309, 17
        %s314 = smul.addr %s313, 3
        %s315 = smul.addr %s311, 54
        %s316 = sadd.s32 %s314, %s315
        %s317 = smul.addr %s316, 8
        %s318 = scalar_lea.vmem %s1, %s317
        %p319 = pneg %p94
        %p320 = pneg %p91
        %p321 = pneg %p115
        %p322 = pneg %p112
        %p323 = pneg %p136
        %p324 = pneg %p133
        %p325 = pneg %p157
        %p326 = pneg %p154
        %p327 = pneg %p178
        %p328 = pneg %p175
        %p329 = pneg %p210
        %p330 = pneg %p207
        %s331 = sand.u32 %s197, 1
        %s332 = scalar_lea.sflag [#allocation5], %s331
        %s333 = sand.u32 %s197, 1
        %s334 = smul.addr %s333, 256
        %s335 = scalar_lea.vmem [#allocation4], %s334
        %s336 = smul.u32 16, %s27
        %s337 = ssub.s32 18, %s336
        %p338 = scmp.lt.s32.totalorder %s337, 16
        %s339 = scalar_select %p338, %s337, 16
        %s340 = smul.u32 128, %s339
        %s341 = smul.u32 %s340, 3
        %p342 = scmp.lt.s32.totalorder %s26, 1
        %s343 = scalar_select %p342, %s26, 1
        %p344 = scmp.lt.s32.totalorder %s336, 17
        %s345 = scalar_select %p344, %s336, 17
        %s346 = smul.addr %s345, 3
        %s347 = smul.addr %s343, 54
        %s348 = sadd.s32 %s346, %s347
        %s349 = smul.addr %s348, 8
        %s350 = scalar_lea.vmem %s0, %s349
        %s351 = smul.u32 16, %s27
        %s352 = ssub.s32 18, %s351
        %p353 = scmp.lt.s32.totalorder %s352, 16
        %s354 = scalar_select %p353, %s352, 16
        %s355 = smul.u32 128, %s354
        %s356 = smul.u32 %s355, 3
        %s357 = sadd.s32 %s27, 1
        %s358 = smul.u32 %s357, 8
        %s359 = smul.u32 2, %s358
        %p360 = scmp.lt.s32.totalorder %s26, 1
        %s361 = scalar_select %p360, %s26, 1
        %p362 = scmp.lt.s32.totalorder %s359, 17
        %s363 = scalar_select %p362, %s359, 17
        %s364 = smul.addr %s363, 3
        %s365 = smul.addr %s361, 54
        %s366 = sadd.s32 %s364, %s365
        %s367 = smul.addr %s366, 8
        %s368 = scalar_lea.vmem %s1, %s367
        %s369 = sadd.s32 %s27, 1
        %s370 = smul.u32 %s369, 8
        %s371 = smul.u32 2, %s370
        %s372 = smul.u32 %s26, %s25
        %s373 = smul.u32 %s27, %s25
        %s374 = smul.u32 16, %s373
        %v375 = vld [vmem:[%s350] sm:$0xff]
        %v376 = vld [vmem:[%s350 + $0x8] sm:$0xff]
        %v377 = vld [vmem:[%s350 + $0x10] sm:$0x3]
        %v378 = vld [vmem:[%s350 + $0x18] sm:$0xff]
        %v379 = vld [vmem:[%s350 + $0x20] sm:$0xff]
        %v380 = vld [vmem:[%s350 + $0x28] sm:$0x3]
        %v381 = vld [vmem:[%s350 + $0x30] sm:$0xff]
        %v382 = vld [vmem:[%s350 + $0x38] sm:$0xff]
        %v383 = vld [vmem:[%s350 + $0x40] sm:$0x3]
        %v384 = vld [vmem:[%s350 + $0x48] sm:$0xff]
        %v385 = vld [vmem:[%s350 + $0x50] sm:$0xff]
        %v386 = vld [vmem:[%s350 + $0x58] sm:$0x3]
        %v387 = vld [vmem:[%s350 + $0x60] sm:$0xff]
        %v388 = vld [vmem:[%s350 + $0x68] sm:$0xff]
        %v389 = vld [vmem:[%s350 + $0x70] sm:$0x3]
        %v390 = vld [vmem:[%s350 + $0x78] sm:$0xff]
        %v391 = vld [vmem:[%s350 + $0x80] sm:$0xff]
        %v392 = vld [vmem:[%s350 + $0x88] sm:$0x3]
        %v393 = vld [vmem:[%s350 + $0x90] sm:$0xff]
        %v394 = vld [vmem:[%s350 + $0x98] sm:$0xff]
        %v395 = vld [vmem:[%s350 + $0xa0] sm:$0x3]
        %v396 = vld [vmem:[%s350 + $0xa8] sm:$0xff]
        %v397 = vld [vmem:[%s350 + $0xb0] sm:$0xff]
        %v398 = vld [vmem:[%s350 + $0xb8] sm:$0x3]
        %v399 = vld [vmem:[%s350 + $0xc0] sm:$0xff]
        %v400 = vld [vmem:[%s350 + $0xc8] sm:$0xff]
        %v401 = vld [vmem:[%s350 + $0xd0] sm:$0x3]
        %v402 = vld [vmem:[%s350 + $0xd8] sm:$0xff]
        %v403 = vld [vmem:[%s350 + $0xe0] sm:$0xff]
        %v404 = vld [vmem:[%s350 + $0xe8] sm:$0x3]
        %v405 = vld [vmem:[%s350 + $0xf0] sm:$0xff]
        %v406 = vld [vmem:[%s350 + $0xf8] sm:$0xff]
        %v407 = vld [vmem:[%s350 + $0x100] sm:$0x3]
        %v408 = vld [vmem:[%s350 + $0x108] sm:$0xff]
        %v409 = vld [vmem:[%s350 + $0x110] sm:$0xff]
        %v410 = vld [vmem:[%s350 + $0x118] sm:$0x3]
        %v411 = vld [vmem:[%s350 + $0x120] sm:$0xff]
        %v412 = vld [vmem:[%s350 + $0x128] sm:$0xff]
        %v413 = vld [vmem:[%s350 + $0x130] sm:$0x3]
        %v414 = vld [vmem:[%s350 + $0x138] sm:$0xff]
        %v415 = vld [vmem:[%s350 + $0x140] sm:$0xff]
        %v416 = vld [vmem:[%s350 + $0x148] sm:$0x3]
        %v417 = vld [vmem:[%s350 + $0x150] sm:$0xff]
        %v418 = vld [vmem:[%s350 + $0x158] sm:$0xff]
        %v419 = vld [vmem:[%s350 + $0x160] sm:$0x3]
        %v420 = vld [vmem:[%s350 + $0x168] sm:$0xff]
        %v421 = vld [vmem:[%s350 + $0x170] sm:$0xff]
        %v422 = vld [vmem:[%s350 + $0x178] sm:$0x3]
        %v423 = vld [vmem:[%s368] sm:$0xff]
        %v424 = vld [vmem:[%s368 + $0x8] sm:$0xff]
        %v425 = vld [vmem:[%s368 + $0x10] sm:$0x3]
        %v426 = vld [vmem:[%s368 + $0x18] sm:$0xff]
        %v427 = vld [vmem:[%s368 + $0x20] sm:$0xff]
        %v428 = vld [vmem:[%s368 + $0x28] sm:$0x3]
        %vm477 = vcmask 1046528
        %v478 = vrot.slane %v375, 1
        %v479 = vrot.slane %v376, 1
        %v480 = vsel %vm477, %v478, %v479
        %v481 = vrot.slane %v377, 1
        %v482 = vsel %vm477, %v479, %v481
        %v483 = vrot.slane %v378, 1
        %v484 = vrot.slane %v379, 1
        %v485 = vsel %vm477, %v483, %v484
        %v486 = vrot.slane %v380, 1
        %v487 = vsel %vm477, %v484, %v486
        %v488 = vrot.slane %v381, 1
        %v489 = vrot.slane %v382, 1
        %v490 = vsel %vm477, %v488, %v489
        %v491 = vrot.slane %v383, 1
        %v492 = vsel %vm477, %v489, %v491
        %v493 = vrot.slane %v384, 1
        %v494 = vrot.slane %v385, 1
        %v495 = vsel %vm477, %v493, %v494
        %v496 = vrot.slane %v386, 1
        %v497 = vsel %vm477, %v494, %v496
        %v498 = vrot.slane %v387, 1
        %v499 = vrot.slane %v388, 1
        %v500 = vsel %vm477, %v498, %v499
        %v501 = vrot.slane %v389, 1
        %v502 = vsel %vm477, %v499, %v501
        %v503 = vrot.slane %v390, 1
        %v504 = vrot.slane %v391, 1
        %v505 = vsel %vm477, %v503, %v504
        %v506 = vrot.slane %v392, 1
        %v507 = vsel %vm477, %v504, %v506
        %v508 = vrot.slane %v393, 1
        %v509 = vrot.slane %v394, 1
        %v510 = vsel %vm477, %v508, %v509
        %v511 = vrot.slane %v395, 1
        %v512 = vsel %vm477, %v509, %v511
        %v513 = vrot.slane %v396, 1
        %v514 = vrot.slane %v397, 1
        %v515 = vsel %vm477, %v513, %v514
        %v516 = vrot.slane %v398, 1
        %v517 = vsel %vm477, %v514, %v516
        %v518 = vrot.slane %v399, 1
        %v519 = vrot.slane %v400, 1
        %v520 = vsel %vm477, %v518, %v519
        %v521 = vrot.slane %v401, 1
        %v522 = vsel %vm477, %v519, %v521
        %v523 = vrot.slane %v402, 1
        %v524 = vrot.slane %v403, 1
        %v525 = vsel %vm477, %v523, %v524
        %v526 = vrot.slane %v404, 1
        %v527 = vsel %vm477, %v524, %v526
        %v528 = vrot.slane %v405, 1
        %v529 = vrot.slane %v406, 1
        %v530 = vsel %vm477, %v528, %v529
        %v531 = vrot.slane %v407, 1
        %v532 = vsel %vm477, %v529, %v531
        %v533 = vrot.slane %v408, 1
        %v534 = vrot.slane %v409, 1
        %v535 = vsel %vm477, %v533, %v534
        %v536 = vrot.slane %v410, 1
        %v537 = vsel %vm477, %v534, %v536
        %v538 = vrot.slane %v411, 1
        %v539 = vrot.slane %v412, 1
        %v540 = vsel %vm477, %v538, %v539
        %v541 = vrot.slane %v413, 1
        %v542 = vsel %vm477, %v539, %v541
        %v543 = vrot.slane %v414, 1
        %v544 = vrot.slane %v415, 1
        %v545 = vsel %vm477, %v543, %v544
        %v546 = vrot.slane %v416, 1
        %v547 = vsel %vm477, %v544, %v546
        %v548 = vrot.slane %v417, 1
        %v549 = vrot.slane %v418, 1
        %v550 = vsel %vm477, %v548, %v549
        %v551 = vrot.slane %v419, 1
        %v552 = vsel %vm477, %v549, %v551
        %v553 = vrot.slane %v420, 1
        %v554 = vrot.slane %v421, 1
        %v555 = vsel %vm477, %v553, %v554
        %v556 = vrot.slane %v422, 1
        %v557 = vsel %vm477, %v554, %v556
        %vm590 = vcmask 1045504
        %v591 = vrot.slane %v375, 2
        %v592 = vrot.slane %v376, 2
        %v593 = vsel %vm590, %v591, %v592
        %v594 = vrot.slane %v377, 2
        %v595 = vsel %vm590, %v592, %v594
        %v596 = vrot.slane %v378, 2
        %v597 = vrot.slane %v379, 2
        %v598 = vsel %vm590, %v596, %v597
        %v599 = vrot.slane %v380, 2
        %v600 = vsel %vm590, %v597, %v599
        %v601 = vrot.slane %v381, 2
        %v602 = vrot.slane %v382, 2
        %v603 = vsel %vm590, %v601, %v602
        %v604 = vrot.slane %v383, 2
        %v605 = vsel %vm590, %v602, %v604
        %v606 = vrot.slane %v384, 2
        %v607 = vrot.slane %v385, 2
        %v608 = vsel %vm590, %v606, %v607
        %v609 = vrot.slane %v386, 2
        %v610 = vsel %vm590, %v607, %v609
        %v611 = vrot.slane %v387, 2
        %v612 = vrot.slane %v388, 2
        %v613 = vsel %vm590, %v611, %v612
        %v614 = vrot.slane %v389, 2
        %v615 = vsel %vm590, %v612, %v614
        %v616 = vrot.slane %v390, 2
        %v617 = vrot.slane %v391, 2
        %v618 = vsel %vm590, %v616, %v617
        %v619 = vrot.slane %v392, 2
        %v620 = vsel %vm590, %v617, %v619
        %v621 = vrot.slane %v393, 2
        %v622 = vrot.slane %v394, 2
        %v623 = vsel %vm590, %v621, %v622
        %v624 = vrot.slane %v395, 2
        %v625 = vsel %vm590, %v622, %v624
        %v626 = vrot.slane %v396, 2
        %v627 = vrot.slane %v397, 2
        %v628 = vsel %vm590, %v626, %v627
        %v629 = vrot.slane %v398, 2
        %v630 = vsel %vm590, %v627, %v629
        %v631 = vrot.slane %v399, 2
        %v632 = vrot.slane %v400, 2
        %v633 = vsel %vm590, %v631, %v632
        %v634 = vrot.slane %v401, 2
        %v635 = vsel %vm590, %v632, %v634
        %v636 = vrot.slane %v402, 2
        %v637 = vrot.slane %v403, 2
        %v638 = vsel %vm590, %v636, %v637
        %v639 = vrot.slane %v404, 2
        %v640 = vsel %vm590, %v637, %v639
        %v641 = vrot.slane %v405, 2
        %v642 = vrot.slane %v406, 2
        %v643 = vsel %vm590, %v641, %v642
        %v644 = vrot.slane %v407, 2
        %v645 = vsel %vm590, %v642, %v644
        %v646 = vrot.slane %v408, 2
        %v647 = vrot.slane %v409, 2
        %v648 = vsel %vm590, %v646, %v647
        %v649 = vrot.slane %v410, 2
        %v650 = vsel %vm590, %v647, %v649
        %v651 = vrot.slane %v411, 2
        %v652 = vrot.slane %v412, 2
        %v653 = vsel %vm590, %v651, %v652
        %v654 = vrot.slane %v413, 2
        %v655 = vsel %vm590, %v652, %v654
        %v656 = vrot.slane %v414, 2
        %v657 = vrot.slane %v415, 2
        %v658 = vsel %vm590, %v656, %v657
        %v659 = vrot.slane %v416, 2
        %v660 = vsel %vm590, %v657, %v659
        %v661 = vrot.slane %v417, 2
        %v662 = vrot.slane %v418, 2
        %v663 = vsel %vm590, %v661, %v662
        %v664 = vrot.slane %v419, 2
        %v665 = vsel %vm590, %v662, %v664
        %v666 = vrot.slane %v420, 2
        %v667 = vrot.slane %v421, 2
        %v668 = vsel %vm590, %v666, %v667
        %v669 = vrot.slane %v422, 2
        %v670 = vsel %vm590, %v667, %v669
        %v706 = vrot.slane %v423, 1
        %v707 = vrot.slane %v424, 1
        %v708 = vsel %vm477, %v706, %v707
        %v709 = vrot.slane %v425, 1
        %v710 = vsel %vm477, %v707, %v709
        %v713 = vrot.slane %v423, 2
        %v714 = vrot.slane %v424, 2
        %v715 = vsel %vm590, %v713, %v714
        %v716 = vrot.slane %v425, 2
        %v717 = vsel %vm590, %v714, %v716
        %v723 = vrot.slane %v426, 1
        %v724 = vrot.slane %v427, 1
        %v725 = vsel %vm477, %v723, %v724
        %v726 = vrot.slane %v428, 1
        %v727 = vsel %vm477, %v724, %v726
        %v730 = vrot.slane %v426, 2
        %v731 = vrot.slane %v427, 2
        %v732 = vsel %vm590, %v730, %v731
        %v733 = vrot.slane %v428, 2
        %v734 = vsel %vm590, %v731, %v733
        %v737 = vld [vmem:[%s2] sm:$0xff]
        %v738 = vld [vmem:[%s2 + $0x8] sm:$0xff]
        %v739 = vld [vmem:[%s2 + $0x10] sm:$0xff]
        %v740 = vld [vmem:[%s2 + $0x18] sm:$0xff]
        %v741 = vld [vmem:[%s2 + $0x20] sm:$0xff]
        %v742 = vld [vmem:[%s2 + $0x28] sm:$0xff]
        %v743 = vld [vmem:[%s2 + $0x30] sm:$0xff]
        %v744 = vld [vmem:[%s2 + $0x38] sm:$0xff]
        %v745 = vld [vmem:[%s2 + $0x40] sm:$0xff]
        %v746 = vld [vmem:[%s2 + $0x48] sm:$0xff]
        %v747 = vld [vmem:[%s2 + $0x50] sm:$0xff]
        %v748 = vld [vmem:[%s2 + $0x58] sm:$0xff]
        %v749 = vld [vmem:[%s2 + $0x60] sm:$0xff]
        %v750 = vld [vmem:[%s2 + $0x68] sm:$0xff]
        %v751 = vld [vmem:[%s2 + $0x70] sm:$0xff]
        %v752 = vld [vmem:[%s2 + $0x78] sm:$0xff]
        %v753 = vld [vmem:[%s2 + $0x80] sm:$0xff]
        %v754 = vld [vmem:[%s2 + $0x88] sm:$0xff]
        %v755 = vld [vmem:[%s2 + $0x90] sm:$0xff]
        %v756 = vld [vmem:[%s2 + $0x98] sm:$0xff]
        %v757 = vld [vmem:[%s2 + $0xa0] sm:$0xff]
        %v758 = vld [vmem:[%s2 + $0xa8] sm:$0xff]
        %v759 = vld [vmem:[%s2 + $0xb0] sm:$0xff]
        %v760 = vld [vmem:[%s2 + $0xb8] sm:$0xff]
        %v761 = vld [vmem:[%s2 + $0xc0] sm:$0xff]
        %v762 = vld [vmem:[%s2 + $0xc8] sm:$0xff]
        %v763 = vld [vmem:[%s2 + $0xd0] sm:$0xff]
        %v764 = vld [vmem:[%s2 + $0xd8] sm:$0xff]
        %v765 = vld [vmem:[%s2 + $0xe0] sm:$0xff]
        %v766 = vld [vmem:[%s2 + $0xe8] sm:$0xff]
        %v767 = vld [vmem:[%s2 + $0xf0] sm:$0xff]
        %v768 = vld [vmem:[%s2 + $0xf8] sm:$0xff]
        %v769 = vld [vmem:[%s2 + $0x100] sm:$0xff]
        %v770 = vld [vmem:[%s2 + $0x108] sm:$0xff]
        %v771 = vld [vmem:[%s2 + $0x110] sm:$0xff]
        %v772 = vld [vmem:[%s2 + $0x118] sm:$0xff]
        %v773 = vld [vmem:[%s2 + $0x120] sm:$0xff]
        %v774 = vld [vmem:[%s2 + $0x128] sm:$0xff]
        %v775 = vld [vmem:[%s2 + $0x130] sm:$0xff]
        %v776 = vld [vmem:[%s2 + $0x138] sm:$0xff]
        %v777 = vld [vmem:[%s2 + $0x140] sm:$0xff]
        %v778 = vld [vmem:[%s2 + $0x148] sm:$0xff]
        %v779 = vld [vmem:[%s2 + $0x150] sm:$0xff]
        %v780 = vld [vmem:[%s2 + $0x158] sm:$0xff]
        %v781 = vld [vmem:[%s2 + $0x160] sm:$0xff]
        %v782 = vld [vmem:[%s2 + $0x168] sm:$0xff]
        %v783 = vld [vmem:[%s2 + $0x170] sm:$0xff]
        %v784 = vld [vmem:[%s2 + $0x178] sm:$0xff]
        %v785 = vld [vmem:[%s2 + $0x180] sm:$0xff]
        %v786 = vld [vmem:[%s2 + $0x188] sm:$0xff]
        %v787 = vld [vmem:[%s2 + $0x190] sm:$0xff]
        %v788 = vld [vmem:[%s2 + $0x198] sm:$0xff]
        %v789 = vld [vmem:[%s2 + $0x1a0] sm:$0xff]
        %v790 = vld [vmem:[%s2 + $0x1a8] sm:$0xff]
        %v791 = vld [vmem:[%s2 + $0x1b0] sm:$0xff]
        %v792 = vld [vmem:[%s2 + $0x1b8] sm:$0xff]
        %v793 = vld [vmem:[%s2 + $0x1c0] sm:$0xff]
        %v794 = vld [vmem:[%s2 + $0x1c8] sm:$0xff]
        %v795 = vld [vmem:[%s2 + $0x1d0] sm:$0xff]
        %v796 = vld [vmem:[%s2 + $0x1d8] sm:$0xff]
        %v797 = vld [vmem:[%s2 + $0x1e0] sm:$0xff]
        %v798 = vld [vmem:[%s2 + $0x1e8] sm:$0xff]
        %v799 = vld [vmem:[%s2 + $0x1f0] sm:$0xff]
        %v800 = vld [vmem:[%s2 + $0x1f8] sm:$0xff]
        %v801 = vld [vmem:[%s2 + $0x200] sm:$0xff]
        %v802 = vld [vmem:[%s2 + $0x208] sm:$0xff]
        %v803 = vld [vmem:[%s2 + $0x210] sm:$0xff]
        %v804 = vld [vmem:[%s2 + $0x218] sm:$0xff]
        %v805 = vld [vmem:[%s2 + $0x220] sm:$0xff]
        %v806 = vld [vmem:[%s2 + $0x228] sm:$0xff]
        %v807 = vld [vmem:[%s2 + $0x230] sm:$0xff]
        %v808 = vld [vmem:[%s2 + $0x238] sm:$0xff]
        %v809 = vld [vmem:[%s2 + $0x240] sm:$0xff]
        %v810 = vld [vmem:[%s2 + $0x248] sm:$0xff]
        %v811 = vld [vmem:[%s2 + $0x250] sm:$0xff]
        %v812 = vld [vmem:[%s2 + $0x258] sm:$0xff]
        %v813 = vld [vmem:[%s2 + $0x260] sm:$0xff]
        %v814 = vld [vmem:[%s2 + $0x268] sm:$0xff]
        %v815 = vld [vmem:[%s2 + $0x270] sm:$0xff]
        %v816 = vld [vmem:[%s2 + $0x278] sm:$0xff]
        %v817 = vld [vmem:[%s2 + $0x280] sm:$0xff]
        %v818 = vld [vmem:[%s2 + $0x288] sm:$0xff]
        %v819 = vld [vmem:[%s2 + $0x290] sm:$0xff]
        %v820 = vld [vmem:[%s2 + $0x298] sm:$0xff]
        %v821 = vld [vmem:[%s2 + $0x2a0] sm:$0xff]
        %v822 = vld [vmem:[%s2 + $0x2a8] sm:$0xff]
        %v823 = vld [vmem:[%s2 + $0x2b0] sm:$0xff]
        %v824 = vld [vmem:[%s2 + $0x2b8] sm:$0xff]
        %v825 = vld [vmem:[%s2 + $0x2c0] sm:$0xff]
        %v826 = vld [vmem:[%s2 + $0x2c8] sm:$0xff]
        %v827 = vld [vmem:[%s2 + $0x2d0] sm:$0xff]
        %v828 = vld [vmem:[%s2 + $0x2d8] sm:$0xff]
        %v829 = vld [vmem:[%s2 + $0x2e0] sm:$0xff]
        %v830 = vld [vmem:[%s2 + $0x2e8] sm:$0xff]
        %v831 = vld [vmem:[%s2 + $0x2f0] sm:$0xff]
        %v832 = vld [vmem:[%s2 + $0x2f8] sm:$0xff]
        %v833 = vld [vmem:[%s2 + $0x300] sm:$0xff]
        %v834 = vld [vmem:[%s2 + $0x308] sm:$0xff]
        %v835 = vld [vmem:[%s2 + $0x310] sm:$0xff]
        %v836 = vld [vmem:[%s2 + $0x318] sm:$0xff]
        %v837 = vld [vmem:[%s2 + $0x320] sm:$0xff]
        %v838 = vld [vmem:[%s2 + $0x328] sm:$0xff]
        %v839 = vld [vmem:[%s2 + $0x330] sm:$0xff]
        %v840 = vld [vmem:[%s2 + $0x338] sm:$0xff]
        %v841 = vld [vmem:[%s2 + $0x340] sm:$0xff]
        %v842 = vld [vmem:[%s2 + $0x348] sm:$0xff]
        %v843 = vld [vmem:[%s2 + $0x350] sm:$0xff]
        %v844 = vld [vmem:[%s2 + $0x358] sm:$0xff]
        %v845 = vld [vmem:[%s2 + $0x360] sm:$0xff]
        %v846 = vld [vmem:[%s2 + $0x368] sm:$0xff]
        %v847 = vld [vmem:[%s2 + $0x370] sm:$0xff]
        %v848 = vld [vmem:[%s2 + $0x378] sm:$0xff]
        %v849 = vld [vmem:[%s2 + $0x380] sm:$0xff]
        %v850 = vld [vmem:[%s2 + $0x388] sm:$0xff]
        %v851 = vld [vmem:[%s2 + $0x390] sm:$0xff]
        %v852 = vld [vmem:[%s2 + $0x398] sm:$0xff]
        %v853 = vld [vmem:[%s2 + $0x3a0] sm:$0xff]
        %v854 = vld [vmem:[%s2 + $0x3a8] sm:$0xff]
        %v855 = vld [vmem:[%s2 + $0x3b0] sm:$0xff]
        %v856 = vld [vmem:[%s2 + $0x3b8] sm:$0xff]
        %v857 = vld [vmem:[%s2 + $0x3c0] sm:$0xff]
        %v858 = vld [vmem:[%s2 + $0x3c8] sm:$0xff]
        %v859 = vld [vmem:[%s2 + $0x3d0] sm:$0xff]
        %v860 = vld [vmem:[%s2 + $0x3d8] sm:$0xff]
        %v861 = vld [vmem:[%s2 + $0x3e0] sm:$0xff]
        %v862 = vld [vmem:[%s2 + $0x3e8] sm:$0xff]
        %v863 = vld [vmem:[%s2 + $0x3f0] sm:$0xff]
        %v864 = vld [vmem:[%s2 + $0x3f8] sm:$0xff]
        %v865 = vld [vmem:[%s2 + $0x400] sm:$0xff]
        %v866 = vld [vmem:[%s2 + $0x408] sm:$0xff]
        %v867 = vld [vmem:[%s2 + $0x410] sm:$0xff]
        %v868 = vld [vmem:[%s2 + $0x418] sm:$0xff]
        %v869 = vld [vmem:[%s2 + $0x420] sm:$0xff]
        %v870 = vld [vmem:[%s2 + $0x428] sm:$0xff]
        %v871 = vld [vmem:[%s2 + $0x430] sm:$0xff]
        %v872 = vld [vmem:[%s2 + $0x438] sm:$0xff]
        %v873 = vld [vmem:[%s2 + $0x440] sm:$0xff]
        %v874 = vld [vmem:[%s2 + $0x448] sm:$0xff]
        %v875 = vld [vmem:[%s2 + $0x450] sm:$0xff]
        %v876 = vld [vmem:[%s2 + $0x458] sm:$0xff]
        %v877 = vld [vmem:[%s2 + $0x460] sm:$0xff]
        %v878 = vld [vmem:[%s2 + $0x468] sm:$0xff]
        %v879 = vld [vmem:[%s2 + $0x470] sm:$0xff]
        %v880 = vld [vmem:[%s2 + $0x478] sm:$0xff]
        %v881 = vld [vmem:[%s3] sm:$0x1]
        %v883 = vlaneseq
        %v884 = vshrl.u32 %v883, 7
        %v885 = vsub.s32 0, %v884
        %v886 = vrot.slane %v881, %v885
        %888 = vmatprep.subr.mxu0 0.0
        %889 = vmatpush1.msra.mxu0 %v737
        %890 = vmatprep.subr.mxu0 0.0
        %891 = vmatpush1.msra.mxu0 %v738
        %892 = vmatprep.subr.mxu0 0.0
        %893 = vmatpush1.msra.mxu0 %v739
        %894 = vmatprep.subr.mxu0 0.0
        %895 = vmatpush1.msra.mxu0 %v740
        %896 = vmatprep.subr.mxu0 0.0
        %897 = vmatpush1.msra.mxu0 %v741
        %898 = vmatprep.subr.mxu0 0.0
        %899 = vmatpush1.msra.mxu0 %v742
        %900 = vmatprep.subr.mxu0 0.0
        %901 = vmatpush1.msra.mxu0 %v743
        %902 = vmatprep.subr.mxu0 0.0
        %903 = vmatpush1.msra.mxu0 %v744
        %904 = vmatprep.subr.mxu0 0.0
        %905 = vmatpush1.msra.mxu0 %v745
        %906 = vmatprep.subr.mxu0 0.0
        %907 = vmatpush1.msra.mxu0 %v746
        %908 = vmatprep.subr.mxu0 0.0
        %909 = vmatpush1.msra.mxu0 %v747
        %910 = vmatprep.subr.mxu0 0.0
        %911 = vmatpush1.msra.mxu0 %v748
        %912 = vmatprep.subr.mxu0 0.0
        %913 = vmatpush1.msra.mxu0 %v749
        %914 = vmatprep.subr.mxu0 0.0
        %915 = vmatpush1.msra.mxu0 %v750
        %916 = vmatprep.subr.mxu0 0.0
        %917 = vmatpush1.msra.mxu0 %v751
        %918 = vmatprep.subr.mxu0 0.0
        %919 = vmatpush1.msra.mxu0 %v752
        %920 = vmatprep.subr.mxu0 0.0
        %921 = vmatpush1.msra.mxu0 %v753
        %922 = vmatprep.subr.mxu0 0.0
        %923 = vmatpush1.msra.mxu0 %v754
        %924 = vmatprep.subr.mxu0 0.0
        %925 = vmatpush1.msra.mxu0 %v755
        %926 = vmatprep.subr.mxu0 0.0
        %927 = vmatpush1.msra.mxu0 %v756
        %928 = vmatprep.subr.mxu0 0.0
        %929 = vmatpush1.msra.mxu0 %v757
        %930 = vmatprep.subr.mxu0 0.0
        %931 = vmatpush1.msra.mxu0 %v758
        %932 = vmatprep.subr.mxu0 0.0
        %933 = vmatpush1.msra.mxu0 %v759
        %934 = vmatprep.subr.mxu0 0.0
        %935 = vmatpush1.msra.mxu0 %v760
        %936 = vmatprep.subr.mxu0 0.0
        %937 = vmatpush1.msra.mxu0 %v761
        %938 = vmatprep.subr.mxu0 0.0
        %939 = vmatpush1.msra.mxu0 %v762
        %940 = vmatprep.subr.mxu0 0.0
        %941 = vmatpush1.msra.mxu0 %v763
        %942 = vmatprep.subr.mxu0 0.0
        %943 = vmatpush1.msra.mxu0 %v764
        %944 = vmatprep.subr.mxu0 0.0
        %945 = vmatpush1.msra.mxu0 %v765
        %946 = vmatprep.subr.mxu0 0.0
        %947 = vmatpush1.msra.mxu0 %v766
        %948 = vmatprep.subr.mxu0 0.0
        %949 = vmatpush1.msra.mxu0 %v767
        %950 = vmatprep.subr.mxu0 0.0
        %951 = vmatpush1.msra.mxu0 %v768
        %952 = vmatprep.mubr.f32.mxu0 %v480
        %953 = vmatmul.mubr.f32.gmra.mrb[0].mxu0 %v375
        %v954 = vpop.f32.mrb[0].mxu0
        %v955 = vadd.f32 %v886, %v954
        %v956 = vpop.f32.mrb[0].mxu0
        %957 = vmatprep.mubr.f32.mxu0 %v482
        %958 = vmatmul.mubr.f32.gmra.mrb[0].mxu0 %v376
        %v959 = vpop.f32.mrb[0].mxu0
        %v960 = vadd.f32 %v886, %v959
        %v961 = vpop.f32.mrb[0].mxu0
        %962 = vmatprep.mubr.f32.mxu0 %v485
        %963 = vmatmul.mubr.f32.gmra.mrb[0].mxu0 %v378
        %v964 = vpop.f32.mrb[0].mxu0
        %v965 = vadd.f32 %v886, %v964
        %v966 = vpop.f32.mrb[0].mxu0
        %967 = vmatprep.mubr.f32.mxu0 %v487
        %968 = vmatmul.mubr.f32.gmra.mrb[0].mxu0 %v379
        %v969 = vpop.f32.mrb[0].mxu0
        %v970 = vadd.f32 %v886, %v969
        %v971 = vpop.f32.mrb[0].mxu0
        %972 = vmatprep.mubr.f32.mxu0 %v490
        %973 = vmatmul.mubr.f32.gmra.mrb[0].mxu0 %v381
        %v974 = vpop.f32.mrb[0].mxu0
        %v975 = vadd.f32 %v886, %v974
        %v976 = vpop.f32.mrb[0].mxu0
        %977 = vmatprep.mubr.f32.mxu0 %v492
        %978 = vmatmul.mubr.f32.gmra.mrb[0].mxu0 %v382
        %v979 = vpop.f32.mrb[0].mxu0
        %v980 = vadd.f32 %v886, %v979
        %v981 = vpop.f32.mrb[0].mxu0
        %982 = vmatprep.mubr.f32.mxu0 %v495
        %983 = vmatmul.mubr.f32.gmra.mrb[0].mxu0 %v384
        %v984 = vpop.f32.mrb[0].mxu0
        %v985 = vadd.f32 %v886, %v984
        %v986 = vpop.f32.mrb[0].mxu0
        %987 = vmatprep.mubr.f32.mxu0 %v497
        %988 = vmatmul.mubr.f32.gmra.mrb[0].mxu0 %v385
        %v989 = vpop.f32.mrb[0].mxu0
        %v990 = vadd.f32 %v886, %v989
        %v991 = vpop.f32.mrb[0].mxu0
        %992 = vmatprep.mubr.f32.mxu0 %v500
        %993 = vmatmul.mubr.f32.gmra.mrb[0].mxu0 %v387
        %v994 = vpop.f32.mrb[0].mxu0
        %v995 = vadd.f32 %v886, %v994
        %v996 = vpop.f32.mrb[0].mxu0
        %997 = vmatprep.mubr.f32.mxu0 %v502
        %998 = vmatmul.mubr.f32.gmra.mrb[0].mxu0 %v388
        %v999 = vpop.f32.mrb[0].mxu0
        %v1000 = vadd.f32 %v886, %v999
        %v1001 = vpop.f32.mrb[0].mxu0
        %1002 = vmatprep.mubr.f32.mxu0 %v505
        %1003 = vmatmul.mubr.f32.gmra.mrb[0].mxu0 %v390
        %v1004 = vpop.f32.mrb[0].mxu0
        %v1005 = vadd.f32 %v886, %v1004
        %v1006 = vpop.f32.mrb[0].mxu0
        %1007 = vmatprep.mubr.f32.mxu0 %v507
        %1008 = vmatmul.mubr.f32.gmra.mrb[0].mxu0 %v391
        %v1009 = vpop.f32.mrb[0].mxu0
        %v1010 = vadd.f32 %v886, %v1009
        %v1011 = vpop.f32.mrb[0].mxu0
        %1012 = vmatprep.mubr.f32.mxu0 %v510
        %1013 = vmatmul.mubr.f32.gmra.mrb[0].mxu0 %v393
        %v1014 = vpop.f32.mrb[0].mxu0
        %v1015 = vadd.f32 %v886, %v1014
        %v1016 = vpop.f32.mrb[0].mxu0
        %1017 = vmatprep.mubr.f32.mxu0 %v512
        %1018 = vmatmul.mubr.f32.gmra.mrb[0].mxu0 %v394
        %v1019 = vpop.f32.mrb[0].mxu0
        %v1020 = vadd.f32 %v886, %v1019
        %v1021 = vpop.f32.mrb[0].mxu0
        %1022 = vmatprep.mubr.f32.mxu0 %v515
        %1023 = vmatmul.mubr.f32.gmra.mrb[0].mxu0 %v396
        %v1024 = vpop.f32.mrb[0].mxu0
        %v1025 = vadd.f32 %v886, %v1024
        %v1026 = vpop.f32.mrb[0].mxu0
        %1027 = vmatprep.mubr.f32.mxu0 %v517
        %1028 = vmatmul.mubr.f32.gmra.mrb[0].mxu0 %v397
        %v1029 = vpop.f32.mrb[0].mxu0
        %v1030 = vadd.f32 %v886, %v1029
        %v1031 = vpop.f32.mrb[0].mxu0
        %1032 = vmatprep.mubr.f32.mxu0 %v520
        %1033 = vmatmul.mubr.f32.gmra.mrb[0].mxu0 %v399
        %v1034 = vpop.f32.mrb[0].mxu0
        %v1035 = vadd.f32 %v886, %v1034
        %v1036 = vpop.f32.mrb[0].mxu0
        %1037 = vmatprep.mubr.f32.mxu0 %v522
        %1038 = vmatmul.mubr.f32.gmra.mrb[0].mxu0 %v400
        %v1039 = vpop.f32.mrb[0].mxu0
        %v1040 = vadd.f32 %v886, %v1039
        %v1041 = vpop.f32.mrb[0].mxu0
        %1042 = vmatprep.mubr.f32.mxu0 %v525
        %1043 = vmatmul.mubr.f32.gmra.mrb[0].mxu0 %v402
        %v1044 = vpop.f32.mrb[0].mxu0
        %v1045 = vadd.f32 %v886, %v1044
        %v1046 = vpop.f32.mrb[0].mxu0
        %1047 = vmatprep.mubr.f32.mxu0 %v527
        %1048 = vmatmul.mubr.f32.gmra.mrb[0].mxu0 %v403
        %v1049 = vpop.f32.mrb[0].mxu0
        %v1050 = vadd.f32 %v886, %v1049
        %v1051 = vpop.f32.mrb[0].mxu0
        %1052 = vmatprep.mubr.f32.mxu0 %v530
        %1053 = vmatmul.mubr.f32.gmra.mrb[0].mxu0 %v405
        %v1054 = vpop.f32.mrb[0].mxu0
        %v1055 = vadd.f32 %v886, %v1054
        %v1056 = vpop.f32.mrb[0].mxu0
        %1057 = vmatprep.mubr.f32.mxu0 %v532
        %1058 = vmatmul.mubr.f32.gmra.mrb[0].mxu0 %v406
        %v1059 = vpop.f32.mrb[0].mxu0
        %v1060 = vadd.f32 %v886, %v1059
        %v1061 = vpop.f32.mrb[0].mxu0
        %1062 = vmatprep.mubr.f32.mxu0 %v535
        %1063 = vmatmul.mubr.f32.gmra.mrb[0].mxu0 %v408
        %v1064 = vpop.f32.mrb[0].mxu0
        %v1065 = vadd.f32 %v886, %v1064
        %v1066 = vpop.f32.mrb[0].mxu0
        %1067 = vmatprep.mubr.f32.mxu0 %v537
        %1068 = vmatmul.mubr.f32.gmra.mrb[0].mxu0 %v409
        %v1069 = vpop.f32.mrb[0].mxu0
        %v1070 = vadd.f32 %v886, %v1069
        %v1071 = vpop.f32.mrb[0].mxu0
        %1072 = vmatprep.mubr.f32.mxu0 %v540
        %1073 = vmatmul.mubr.f32.gmra.mrb[0].mxu0 %v411
        %v1074 = vpop.f32.mrb[0].mxu0
        %v1075 = vadd.f32 %v886, %v1074
        %v1076 = vpop.f32.mrb[0].mxu0
        %1077 = vmatprep.mubr.f32.mxu0 %v542
        %1078 = vmatmul.mubr.f32.gmra.mrb[0].mxu0 %v412
        %v1079 = vpop.f32.mrb[0].mxu0
        %v1080 = vadd.f32 %v886, %v1079
        %v1081 = vpop.f32.mrb[0].mxu0
        %1082 = vmatprep.mubr.f32.mxu0 %v545
        %1083 = vmatmul.mubr.f32.gmra.mrb[0].mxu0 %v414
        %v1084 = vpop.f32.mrb[0].mxu0
        %v1085 = vadd.f32 %v886, %v1084
        %v1086 = vpop.f32.mrb[0].mxu0
        %1087 = vmatprep.mubr.f32.mxu0 %v547
        %1088 = vmatmul.mubr.f32.gmra.mrb[0].mxu0 %v415
        %v1089 = vpop.f32.mrb[0].mxu0
        %v1090 = vadd.f32 %v886, %v1089
        %v1091 = vpop.f32.mrb[0].mxu0
        %1092 = vmatprep.mubr.f32.mxu0 %v550
        %1093 = vmatmul.mubr.f32.gmra.mrb[0].mxu0 %v417
        %v1094 = vpop.f32.mrb[0].mxu0
        %v1095 = vadd.f32 %v886, %v1094
        %v1096 = vpop.f32.mrb[0].mxu0
        %1097 = vmatprep.mubr.f32.mxu0 %v552
        %1098 = vmatmul.mubr.f32.gmra.mrb[0].mxu0 %v418
        %v1099 = vpop.f32.mrb[0].mxu0
        %v1100 = vadd.f32 %v886, %v1099
        %v1101 = vpop.f32.mrb[0].mxu0
        %1102 = vmatprep.mubr.f32.mxu0 %v555
        %1103 = vmatmul.mubr.f32.gmra.mrb[0].mxu0 %v420
        %v1104 = vpop.f32.mrb[0].mxu0
        %v1105 = vadd.f32 %v886, %v1104
        %v1106 = vpop.f32.mrb[0].mxu0
        %1107 = vmatprep.mubr.f32.mxu0 %v557
        %1108 = vmatmul.mubr.f32.gmra.mrb[0].mxu0 %v421
        %v1109 = vpop.f32.mrb[0].mxu0
        %v1110 = vadd.f32 %v886, %v1109
        %v1111 = vpop.f32.mrb[0].mxu0
        %1112 = vdwg.mxu0
        %1113 = vmatprep.subr.mxu0 0.0
        %1114 = vmatpush1.msra.mxu0 %v769
        %1115 = vmatprep.subr.mxu0 0.0
        %1116 = vmatpush1.msra.mxu0 %v770
        %1117 = vmatprep.subr.mxu0 0.0
        %1118 = vmatpush1.msra.mxu0 %v771
        %1119 = vmatprep.subr.mxu0 0.0
        %1120 = vmatpush1.msra.mxu0 %v772
        %1121 = vmatprep.subr.mxu0 0.0
        %1122 = vmatpush1.msra.mxu0 %v773
        %1123 = vmatprep.subr.mxu0 0.0
        %1124 = vmatpush1.msra.mxu0 %v774
        %1125 = vmatprep.subr.mxu0 0.0
        %1126 = vmatpush1.msra.mxu0 %v775
        %1127 = vmatprep.subr.mxu0 0.0
        %1128 = vmatpush1.msra.mxu0 %v776
        %1129 = vmatprep.subr.mxu0 0.0
        %1130 = vmatpush1.msra.mxu0 %v777
        %1131 = vmatprep.subr.mxu0 0.0
        %1132 = vmatpush1.msra.mxu0 %v778
        %1133 = vmatprep.subr.mxu0 0.0
        %1134 = vmatpush1.msra.mxu0 %v779
        %1135 = vmatprep.subr.mxu0 0.0
        %1136 = vmatpush1.msra.mxu0 %v780
        %1137 = vmatprep.subr.mxu0 0.0
        %1138 = vmatpush1.msra.mxu0 %v781
        %1139 = vmatprep.subr.mxu0 0.0
        %1140 = vmatpush1.msra.mxu0 %v782
        %1141 = vmatprep.subr.mxu0 0.0
        %1142 = vmatpush1.msra.mxu0 %v783
        %1143 = vmatprep.subr.mxu0 0.0
        %1144 = vmatpush1.msra.mxu0 %v784
        %1145 = vmatprep.subr.mxu0 0.0
        %1146 = vmatpush1.msra.mxu0 %v785
        %1147 = vmatprep.subr.mxu0 0.0
        %1148 = vmatpush1.msra.mxu0 %v786
        %1149 = vmatprep.subr.mxu0 0.0
        %1150 = vmatpush1.msra.mxu0 %v787
        %1151 = vmatprep.subr.mxu0 0.0
        %1152 = vmatpush1.msra.mxu0 %v788
        %1153 = vmatprep.subr.mxu0 0.0
        %1154 = vmatpush1.msra.mxu0 %v789
        %1155 = vmatprep.subr.mxu0 0.0
        %1156 = vmatpush1.msra.mxu0 %v790
        %1157 = vmatprep.subr.mxu0 0.0
        %1158 = vmatpush1.msra.mxu0 %v791
        %1159 = vmatprep.subr.mxu0 0.0
        %1160 = vmatpush1.msra.mxu0 %v792
        %1161 = vmatprep.subr.mxu0 0.0
        %1162 = vmatpush1.msra.mxu0 %v793
        %1163 = vmatprep.subr.mxu0 0.0
        %1164 = vmatpush1.msra.mxu0 %v794
        %1165 = vmatprep.subr.mxu0 0.0
        %1166 = vmatpush1.msra.mxu0 %v795
        %1167 = vmatprep.subr.mxu0 0.0
        %1168 = vmatpush1.msra.mxu0 %v796
        %1169 = vmatprep.subr.mxu0 0.0
        %1170 = vmatpush1.msra.mxu0 %v797
        %1171 = vmatprep.subr.mxu0 0.0
        %1172 = vmatpush1.msra.mxu0 %v798
        %1173 = vmatprep.subr.mxu0 0.0
        %1174 = vmatpush1.msra.mxu0 %v799
        %1175 = vmatprep.subr.mxu0 0.0
        %1176 = vmatpush1.msra.mxu0 %v800
        %1177 = vmatprep.mubr.f32.mxu0 %v378
        %1178 = vmatmul.mubr.f32.gmra.mrb[0].mxu0 %v593
        %v1179 = vpop.f32.mrb[0].mxu0
        %v1180 = vadd.f32 %v955, %v1179
        %v1181 = vpop.f32.mrb[0].mxu0
        %1182 = vmatprep.mubr.f32.mxu0 %v379
        %1183 = vmatmul.mubr.f32.gmra.mrb[0].mxu0 %v595
        %v1184 = vpop.f32.mrb[0].mxu0
        %v1185 = vadd.f32 %v960, %v1184
        %v1186 = vpop.f32.mrb[0].mxu0
        %1187 = vmatprep.mubr.f32.mxu0 %v381
        %1188 = vmatmul.mubr.f32.gmra.mrb[0].mxu0 %v598
        %v1189 = vpop.f32.mrb[0].mxu0
        %v1190 = vadd.f32 %v965, %v1189
        %v1191 = vpop.f32.mrb[0].mxu0
        %1192 = vmatprep.mubr.f32.mxu0 %v382
        %1193 = vmatmul.mubr.f32.gmra.mrb[0].mxu0 %v600
        %v1194 = vpop.f32.mrb[0].mxu0
        %v1195 = vadd.f32 %v970, %v1194
        %v1196 = vpop.f32.mrb[0].mxu0
        %1197 = vmatprep.mubr.f32.mxu0 %v384
        %1198 = vmatmul.mubr.f32.gmra.mrb[0].mxu0 %v603
        %v1199 = vpop.f32.mrb[0].mxu0
        %v1200 = vadd.f32 %v975, %v1199
        %v1201 = vpop.f32.mrb[0].mxu0
        %1202 = vmatprep.mubr.f32.mxu0 %v385
        %1203 = vmatmul.mubr.f32.gmra.mrb[0].mxu0 %v605
        %v1204 = vpop.f32.mrb[0].mxu0
        %v1205 = vadd.f32 %v980, %v1204
        %v1206 = vpop.f32.mrb[0].mxu0
        %1207 = vmatprep.mubr.f32.mxu0 %v387
        %1208 = vmatmul.mubr.f32.gmra.mrb[0].mxu0 %v608
        %v1209 = vpop.f32.mrb[0].mxu0
        %v1210 = vadd.f32 %v985, %v1209
        %v1211 = vpop.f32.mrb[0].mxu0
        %1212 = vmatprep.mubr.f32.mxu0 %v388
        %1213 = vmatmul.mubr.f32.gmra.mrb[0].mxu0 %v610
        %v1214 = vpop.f32.mrb[0].mxu0
        %v1215 = vadd.f32 %v990, %v1214
        %v1216 = vpop.f32.mrb[0].mxu0
        %1217 = vmatprep.mubr.f32.mxu0 %v390
        %1218 = vmatmul.mubr.f32.gmra.mrb[0].mxu0 %v613
        %v1219 = vpop.f32.mrb[0].mxu0
        %v1220 = vadd.f32 %v995, %v1219
        %v1221 = vpop.f32.mrb[0].mxu0
        %1222 = vmatprep.mubr.f32.mxu0 %v391
        %1223 = vmatmul.mubr.f32.gmra.mrb[0].mxu0 %v615
        %v1224 = vpop.f32.mrb[0].mxu0
        %v1225 = vadd.f32 %v1000, %v1224
        %v1226 = vpop.f32.mrb[0].mxu0
        %1227 = vmatprep.mubr.f32.mxu0 %v393
        %1228 = vmatmul.mubr.f32.gmra.mrb[0].mxu0 %v618
        %v1229 = vpop.f32.mrb[0].mxu0
        %v1230 = vadd.f32 %v1005, %v1229
        %v1231 = vpop.f32.mrb[0].mxu0
        %1232 = vmatprep.mubr.f32.mxu0 %v394
        %1233 = vmatmul.mubr.f32.gmra.mrb[0].mxu0 %v620
        %v1234 = vpop.f32.mrb[0].mxu0
        %v1235 = vadd.f32 %v1010, %v1234
        %v1236 = vpop.f32.mrb[0].mxu0
        %1237 = vmatprep.mubr.f32.mxu0 %v396
        %1238 = vmatmul.mubr.f32.gmra.mrb[0].mxu0 %v623
        %v1239 = vpop.f32.mrb[0].mxu0
        %v1240 = vadd.f32 %v1015, %v1239
        %v1241 = vpop.f32.mrb[0].mxu0
        %1242 = vmatprep.mubr.f32.mxu0 %v397
        %1243 = vmatmul.mubr.f32.gmra.mrb[0].mxu0 %v625
        %v1244 = vpop.f32.mrb[0].mxu0
        %v1245 = vadd.f32 %v1020, %v1244
        %v1246 = vpop.f32.mrb[0].mxu0
        %1247 = vmatprep.mubr.f32.mxu0 %v399
        %1248 = vmatmul.mubr.f32.gmra.mrb[0].mxu0 %v628
        %v1249 = vpop.f32.mrb[0].mxu0
        %v1250 = vadd.f32 %v1025, %v1249
        %v1251 = vpop.f32.mrb[0].mxu0
        %1252 = vmatprep.mubr.f32.mxu0 %v400
        %1253 = vmatmul.mubr.f32.gmra.mrb[0].mxu0 %v630
        %v1254 = vpop.f32.mrb[0].mxu0
        %v1255 = vadd.f32 %v1030, %v1254
        %v1256 = vpop.f32.mrb[0].mxu0
        %1257 = vmatprep.mubr.f32.mxu0 %v402
        %1258 = vmatmul.mubr.f32.gmra.mrb[0].mxu0 %v633
        %v1259 = vpop.f32.mrb[0].mxu0
        %v1260 = vadd.f32 %v1035, %v1259
        %v1261 = vpop.f32.mrb[0].mxu0
        %1262 = vmatprep.mubr.f32.mxu0 %v403
        %1263 = vmatmul.mubr.f32.gmra.mrb[0].mxu0 %v635
        %v1264 = vpop.f32.mrb[0].mxu0
        %v1265 = vadd.f32 %v1040, %v1264
        %v1266 = vpop.f32.mrb[0].mxu0
        %1267 = vmatprep.mubr.f32.mxu0 %v405
        %1268 = vmatmul.mubr.f32.gmra.mrb[0].mxu0 %v638
        %v1269 = vpop.f32.mrb[0].mxu0
        %v1270 = vadd.f32 %v1045, %v1269
        %v1271 = vpop.f32.mrb[0].mxu0
        %1272 = vmatprep.mubr.f32.mxu0 %v406
        %1273 = vmatmul.mubr.f32.gmra.mrb[0].mxu0 %v640
        %v1274 = vpop.f32.mrb[0].mxu0
        %v1275 = vadd.f32 %v1050, %v1274
        %v1276 = vpop.f32.mrb[0].mxu0
        %1277 = vmatprep.mubr.f32.mxu0 %v408
        %1278 = vmatmul.mubr.f32.gmra.mrb[0].mxu0 %v643
        %v1279 = vpop.f32.mrb[0].mxu0
        %v1280 = vadd.f32 %v1055, %v1279
        %v1281 = vpop.f32.mrb[0].mxu0
        %1282 = vmatprep.mubr.f32.mxu0 %v409
        %1283 = vmatmul.mubr.f32.gmra.mrb[0].mxu0 %v645
        %v1284 = vpop.f32.mrb[0].mxu0
        %v1285 = vadd.f32 %v1060, %v1284
        %v1286 = vpop.f32.mrb[0].mxu0
        %1287 = vmatprep.mubr.f32.mxu0 %v411
        %1288 = vmatmul.mubr.f32.gmra.mrb[0].mxu0 %v648
        %v1289 = vpop.f32.mrb[0].mxu0
        %v1290 = vadd.f32 %v1065, %v1289
        %v1291 = vpop.f32.mrb[0].mxu0
        %1292 = vmatprep.mubr.f32.mxu0 %v412
        %1293 = vmatmul.mubr.f32.gmra.mrb[0].mxu0 %v650
        %v1294 = vpop.f32.mrb[0].mxu0
        %v1295 = vadd.f32 %v1070, %v1294
        %v1296 = vpop.f32.mrb[0].mxu0
        %1297 = vmatprep.mubr.f32.mxu0 %v414
        %1298 = vmatmul.mubr.f32.gmra.mrb[0].mxu0 %v653
        %v1299 = vpop.f32.mrb[0].mxu0
        %v1300 = vadd.f32 %v1075, %v1299
        %v1301 = vpop.f32.mrb[0].mxu0
        %1302 = vmatprep.mubr.f32.mxu0 %v415
        %1303 = vmatmul.mubr.f32.gmra.mrb[0].mxu0 %v655
        %v1304 = vpop.f32.mrb[0].mxu0
        %v1305 = vadd.f32 %v1080, %v1304
        %v1306 = vpop.f32.mrb[0].mxu0
        %1307 = vmatprep.mubr.f32.mxu0 %v417
        %1308 = vmatmul.mubr.f32.gmra.mrb[0].mxu0 %v658
        %v1309 = vpop.f32.mrb[0].mxu0
        %v1310 = vadd.f32 %v1085, %v1309
        %v1311 = vpop.f32.mrb[0].mxu0
        %1312 = vmatprep.mubr.f32.mxu0 %v418
        %1313 = vmatmul.mubr.f32.gmra.mrb[0].mxu0 %v660
        %v1314 = vpop.f32.mrb[0].mxu0
        %v1315 = vadd.f32 %v1090, %v1314
        %v1316 = vpop.f32.mrb[0].mxu0
        %1317 = vmatprep.mubr.f32.mxu0 %v420
        %1318 = vmatmul.mubr.f32.gmra.mrb[0].mxu0 %v663
        %v1319 = vpop.f32.mrb[0].mxu0
        %v1320 = vadd.f32 %v1095, %v1319
        %v1321 = vpop.f32.mrb[0].mxu0
        %1322 = vmatprep.mubr.f32.mxu0 %v421
        %1323 = vmatmul.mubr.f32.gmra.mrb[0].mxu0 %v665
        %v1324 = vpop.f32.mrb[0].mxu0
        %v1325 = vadd.f32 %v1100, %v1324
        %v1326 = vpop.f32.mrb[0].mxu0
        %1327 = vmatprep.mubr.f32.mxu0 %v423
        %1328 = vmatmul.mubr.f32.gmra.mrb[0].mxu0 %v668
        %v1329 = vpop.f32.mrb[0].mxu0
        %v1330 = vadd.f32 %v1105, %v1329
        %v1331 = vpop.f32.mrb[0].mxu0
        %1332 = vmatprep.mubr.f32.mxu0 %v424
        %1333 = vmatmul.mubr.f32.gmra.mrb[0].mxu0 %v670
        %v1334 = vpop.f32.mrb[0].mxu0
        %v1335 = vadd.f32 %v1110, %v1334
        %v1336 = vpop.f32.mrb[0].mxu0
        %1337 = vdwg.mxu0
        %1338 = vmatprep.subr.mxu0 0.0
        %1339 = vmatpush1.msra.mxu0 %v801
        %1340 = vmatprep.subr.mxu0 0.0
        %1341 = vmatpush1.msra.mxu0 %v802
        %1342 = vmatprep.subr.mxu0 0.0
        %1343 = vmatpush1.msra.mxu0 %v803
        %1344 = vmatprep.subr.mxu0 0.0
        %1345 = vmatpush1.msra.mxu0 %v804
        %1346 = vmatprep.subr.mxu0 0.0
        %1347 = vmatpush1.msra.mxu0 %v805
        %1348 = vmatprep.subr.mxu0 0.0
        %1349 = vmatpush1.msra.mxu0 %v806
        %1350 = vmatprep.subr.mxu0 0.0
        %1351 = vmatpush1.msra.mxu0 %v807
        %1352 = vmatprep.subr.mxu0 0.0
        %1353 = vmatpush1.msra.mxu0 %v808
        %1354 = vmatprep.subr.mxu0 0.0
        %1355 = vmatpush1.msra.mxu0 %v809
        %1356 = vmatprep.subr.mxu0 0.0
        %1357 = vmatpush1.msra.mxu0 %v810
        %1358 = vmatprep.subr.mxu0 0.0
        %1359 = vmatpush1.msra.mxu0 %v811
        %1360 = vmatprep.subr.mxu0 0.0
        %1361 = vmatpush1.msra.mxu0 %v812
        %1362 = vmatprep.subr.mxu0 0.0
        %1363 = vmatpush1.msra.mxu0 %v813
        %1364 = vmatprep.subr.mxu0 0.0
        %1365 = vmatpush1.msra.mxu0 %v814
        %1366 = vmatprep.subr.mxu0 0.0
        %1367 = vmatpush1.msra.mxu0 %v815
        %1368 = vmatprep.subr.mxu0 0.0
        %1369 = vmatpush1.msra.mxu0 %v816
        %1370 = vmatprep.subr.mxu0 0.0
        %1371 = vmatpush1.msra.mxu0 %v817
        %1372 = vmatprep.subr.mxu0 0.0
        %1373 = vmatpush1.msra.mxu0 %v818
        %1374 = vmatprep.subr.mxu0 0.0
        %1375 = vmatpush1.msra.mxu0 %v819
        %1376 = vmatprep.subr.mxu0 0.0
        %1377 = vmatpush1.msra.mxu0 %v820
        %1378 = vmatprep.subr.mxu0 0.0
        %1379 = vmatpush1.msra.mxu0 %v821
        %1380 = vmatprep.subr.mxu0 0.0
        %1381 = vmatpush1.msra.mxu0 %v822
        %1382 = vmatprep.subr.mxu0 0.0
        %1383 = vmatpush1.msra.mxu0 %v823
        %1384 = vmatprep.subr.mxu0 0.0
        %1385 = vmatpush1.msra.mxu0 %v824
        %1386 = vmatprep.subr.mxu0 0.0
        %1387 = vmatpush1.msra.mxu0 %v825
        %1388 = vmatprep.subr.mxu0 0.0
        %1389 = vmatpush1.msra.mxu0 %v826
        %1390 = vmatprep.subr.mxu0 0.0
        %1391 = vmatpush1.msra.mxu0 %v827
        %1392 = vmatprep.subr.mxu0 0.0
        %1393 = vmatpush1.msra.mxu0 %v828
        %1394 = vmatprep.subr.mxu0 0.0
        %1395 = vmatpush1.msra.mxu0 %v829
        %1396 = vmatprep.subr.mxu0 0.0
        %1397 = vmatpush1.msra.mxu0 %v830
        %1398 = vmatprep.subr.mxu0 0.0
        %1399 = vmatpush1.msra.mxu0 %v831
        %1400 = vmatprep.subr.mxu0 0.0
        %1401 = vmatpush1.msra.mxu0 %v832
        %1402 = vmatprep.mubr.f32.mxu0 %v598
        %1403 = vmatmul.mubr.f32.gmra.mrb[0].mxu0 %v485
        %v1404 = vpop.f32.mrb[0].mxu0
        %v1405 = vadd.f32 %v1180, %v1404
        %v1406 = vpop.f32.mrb[0].mxu0
        %1407 = vmatprep.mubr.f32.mxu0 %v600
        %1408 = vmatmul.mubr.f32.gmra.mrb[0].mxu0 %v487
        %v1409 = vpop.f32.mrb[0].mxu0
        %v1410 = vadd.f32 %v1185, %v1409
        %v1411 = vpop.f32.mrb[0].mxu0
        %1412 = vmatprep.mubr.f32.mxu0 %v603
        %1413 = vmatmul.mubr.f32.gmra.mrb[0].mxu0 %v490
        %v1414 = vpop.f32.mrb[0].mxu0
        %v1415 = vadd.f32 %v1190, %v1414
        %v1416 = vpop.f32.mrb[0].mxu0
        %1417 = vmatprep.mubr.f32.mxu0 %v605
        %1418 = vmatmul.mubr.f32.gmra.mrb[0].mxu0 %v492
        %v1419 = vpop.f32.mrb[0].mxu0
        %v1420 = vadd.f32 %v1195, %v1419
        %v1421 = vpop.f32.mrb[0].mxu0
        %1422 = vmatprep.mubr.f32.mxu0 %v608
        %1423 = vmatmul.mubr.f32.gmra.mrb[0].mxu0 %v495
        %v1424 = vpop.f32.mrb[0].mxu0
        %v1425 = vadd.f32 %v1200, %v1424
        %v1426 = vpop.f32.mrb[0].mxu0
        %1427 = vmatprep.mubr.f32.mxu0 %v610
        %1428 = vmatmul.mubr.f32.gmra.mrb[0].mxu0 %v497
        %v1429 = vpop.f32.mrb[0].mxu0
        %v1430 = vadd.f32 %v1205, %v1429
        %v1431 = vpop.f32.mrb[0].mxu0
        %1432 = vmatprep.mubr.f32.mxu0 %v613
        %1433 = vmatmul.mubr.f32.gmra.mrb[0].mxu0 %v500
        %v1434 = vpop.f32.mrb[0].mxu0
        %v1435 = vadd.f32 %v1210, %v1434
        %v1436 = vpop.f32.mrb[0].mxu0
        %1437 = vmatprep.mubr.f32.mxu0 %v615
        %1438 = vmatmul.mubr.f32.gmra.mrb[0].mxu0 %v502
        %v1439 = vpop.f32.mrb[0].mxu0
        %v1440 = vadd.f32 %v1215, %v1439
        %v1441 = vpop.f32.mrb[0].mxu0
        %1442 = vmatprep.mubr.f32.mxu0 %v618
        %1443 = vmatmul.mubr.f32.gmra.mrb[0].mxu0 %v505
        %v1444 = vpop.f32.mrb[0].mxu0
        %v1445 = vadd.f32 %v1220, %v1444
        %v1446 = vpop.f32.mrb[0].mxu0
        %1447 = vmatprep.mubr.f32.mxu0 %v620
        %1448 = vmatmul.mubr.f32.gmra.mrb[0].mxu0 %v507
        %v1449 = vpop.f32.mrb[0].mxu0
        %v1450 = vadd.f32 %v1225, %v1449
        %v1451 = vpop.f32.mrb[0].mxu0
        %1452 = vmatprep.mubr.f32.mxu0 %v623
        %1453 = vmatmul.mubr.f32.gmra.mrb[0].mxu0 %v510
        %v1454 = vpop.f32.mrb[0].mxu0
        %v1455 = vadd.f32 %v1230, %v1454
        %v1456 = vpop.f32.mrb[0].mxu0
        %1457 = vmatprep.mubr.f32.mxu0 %v625
        %1458 = vmatmul.mubr.f32.gmra.mrb[0].mxu0 %v512
        %v1459 = vpop.f32.mrb[0].mxu0
        %v1460 = vadd.f32 %v1235, %v1459
        %v1461 = vpop.f32.mrb[0].mxu0
        %1462 = vmatprep.mubr.f32.mxu0 %v628
        %1463 = vmatmul.mubr.f32.gmra.mrb[0].mxu0 %v515
        %v1464 = vpop.f32.mrb[0].mxu0
        %v1465 = vadd.f32 %v1240, %v1464
        %v1466 = vpop.f32.mrb[0].mxu0
        %1467 = vmatprep.mubr.f32.mxu0 %v630
        %1468 = vmatmul.mubr.f32.gmra.mrb[0].mxu0 %v517
        %v1469 = vpop.f32.mrb[0].mxu0
        %v1470 = vadd.f32 %v1245, %v1469
        %v1471 = vpop.f32.mrb[0].mxu0
        %1472 = vmatprep.mubr.f32.mxu0 %v633
        %1473 = vmatmul.mubr.f32.gmra.mrb[0].mxu0 %v520
        %v1474 = vpop.f32.mrb[0].mxu0
        %v1475 = vadd.f32 %v1250, %v1474
        %v1476 = vpop.f32.mrb[0].mxu0
        %1477 = vmatprep.mubr.f32.mxu0 %v635
        %1478 = vmatmul.mubr.f32.gmra.mrb[0].mxu0 %v522
        %v1479 = vpop.f32.mrb[0].mxu0
        %v1480 = vadd.f32 %v1255, %v1479
        %v1481 = vpop.f32.mrb[0].mxu0
        %1482 = vmatprep.mubr.f32.mxu0 %v638
        %1483 = vmatmul.mubr.f32.gmra.mrb[0].mxu0 %v525
        %v1484 = vpop.f32.mrb[0].mxu0
        %v1485 = vadd.f32 %v1260, %v1484
        %v1486 = vpop.f32.mrb[0].mxu0
        %1487 = vmatprep.mubr.f32.mxu0 %v640
        %1488 = vmatmul.mubr.f32.gmra.mrb[0].mxu0 %v527
        %v1489 = vpop.f32.mrb[0].mxu0
        %v1490 = vadd.f32 %v1265, %v1489
        %v1491 = vpop.f32.mrb[0].mxu0
        %1492 = vmatprep.mubr.f32.mxu0 %v643
        %1493 = vmatmul.mubr.f32.gmra.mrb[0].mxu0 %v530
        %v1494 = vpop.f32.mrb[0].mxu0
        %v1495 = vadd.f32 %v1270, %v1494
        %v1496 = vpop.f32.mrb[0].mxu0
        %1497 = vmatprep.mubr.f32.mxu0 %v645
        %1498 = vmatmul.mubr.f32.gmra.mrb[0].mxu0 %v532
        %v1499 = vpop.f32.mrb[0].mxu0
        %v1500 = vadd.f32 %v1275, %v1499
        %v1501 = vpop.f32.mrb[0].mxu0
        %1502 = vmatprep.mubr.f32.mxu0 %v648
        %1503 = vmatmul.mubr.f32.gmra.mrb[0].mxu0 %v535
        %v1504 = vpop.f32.mrb[0].mxu0
        %v1505 = vadd.f32 %v1280, %v1504
        %v1506 = vpop.f32.mrb[0].mxu0
        %1507 = vmatprep.mubr.f32.mxu0 %v650
        %1508 = vmatmul.mubr.f32.gmra.mrb[0].mxu0 %v537
        %v1509 = vpop.f32.mrb[0].mxu0
        %v1510 = vadd.f32 %v1285, %v1509
        %v1511 = vpop.f32.mrb[0].mxu0
        %1512 = vmatprep.mubr.f32.mxu0 %v653
        %1513 = vmatmul.mubr.f32.gmra.mrb[0].mxu0 %v540
        %v1514 = vpop.f32.mrb[0].mxu0
        %v1515 = vadd.f32 %v1290, %v1514
        %v1516 = vpop.f32.mrb[0].mxu0
        %1517 = vmatprep.mubr.f32.mxu0 %v655
        %1518 = vmatmul.mubr.f32.gmra.mrb[0].mxu0 %v542
        %v1519 = vpop.f32.mrb[0].mxu0
        %v1520 = vadd.f32 %v1295, %v1519
        %v1521 = vpop.f32.mrb[0].mxu0
        %1522 = vmatprep.mubr.f32.mxu0 %v658
        %1523 = vmatmul.mubr.f32.gmra.mrb[0].mxu0 %v545
        %v1524 = vpop.f32.mrb[0].mxu0
        %v1525 = vadd.f32 %v1300, %v1524
        %v1526 = vpop.f32.mrb[0].mxu0
        %1527 = vmatprep.mubr.f32.mxu0 %v660
        %1528 = vmatmul.mubr.f32.gmra.mrb[0].mxu0 %v547
        %v1529 = vpop.f32.mrb[0].mxu0
        %v1530 = vadd.f32 %v1305, %v1529
        %v1531 = vpop.f32.mrb[0].mxu0
        %1532 = vmatprep.mubr.f32.mxu0 %v663
        %1533 = vmatmul.mubr.f32.gmra.mrb[0].mxu0 %v550
        %v1534 = vpop.f32.mrb[0].mxu0
        %v1535 = vadd.f32 %v1310, %v1534
        %v1536 = vpop.f32.mrb[0].mxu0
        %1537 = vmatprep.mubr.f32.mxu0 %v665
        %1538 = vmatmul.mubr.f32.gmra.mrb[0].mxu0 %v552
        %v1539 = vpop.f32.mrb[0].mxu0
        %v1540 = vadd.f32 %v1315, %v1539
        %v1541 = vpop.f32.mrb[0].mxu0
        %1542 = vmatprep.mubr.f32.mxu0 %v668
        %1543 = vmatmul.mubr.f32.gmra.mrb[0].mxu0 %v555
        %v1544 = vpop.f32.mrb[0].mxu0
        %v1545 = vadd.f32 %v1320, %v1544
        %v1546 = vpop.f32.mrb[0].mxu0
        %1547 = vmatprep.mubr.f32.mxu0 %v670
        %1548 = vmatmul.mubr.f32.gmra.mrb[0].mxu0 %v557
        %v1549 = vpop.f32.mrb[0].mxu0
        %v1550 = vadd.f32 %v1325, %v1549
        %v1551 = vpop.f32.mrb[0].mxu0
        %1552 = vmatprep.mubr.f32.mxu0 %v715
        %1553 = vmatmul.mubr.f32.gmra.mrb[0].mxu0 %v708
        %v1554 = vpop.f32.mrb[0].mxu0
        %v1555 = vadd.f32 %v1330, %v1554
        %v1556 = vpop.f32.mrb[0].mxu0
        %1557 = vmatprep.mubr.f32.mxu0 %v717
        %1558 = vmatmul.mubr.f32.gmra.mrb[0].mxu0 %v710
        %v1559 = vpop.f32.mrb[0].mxu0
        %v1560 = vadd.f32 %v1335, %v1559
        %v1561 = vpop.f32.mrb[0].mxu0
        %1562 = vdwg.mxu0
        %1563 = vmatprep.subr.mxu0 0.0
        %1564 = vmatpush1.msra.mxu0 %v833
        %1565 = vmatprep.subr.mxu0 0.0
        %1566 = vmatpush1.msra.mxu0 %v834
        %1567 = vmatprep.subr.mxu0 0.0
        %1568 = vmatpush1.msra.mxu0 %v835
        %1569 = vmatprep.subr.mxu0 0.0
        %1570 = vmatpush1.msra.mxu0 %v836
        %1571 = vmatprep.subr.mxu0 0.0
        %1572 = vmatpush1.msra.mxu0 %v837
        %1573 = vmatprep.subr.mxu0 0.0
        %1574 = vmatpush1.msra.mxu0 %v838
        %1575 = vmatprep.subr.mxu0 0.0
        %1576 = vmatpush1.msra.mxu0 %v839
        %1577 = vmatprep.subr.mxu0 0.0
        %1578 = vmatpush1.msra.mxu0 %v840
        %1579 = vmatprep.subr.mxu0 0.0
        %1580 = vmatpush1.msra.mxu0 %v841
        %1581 = vmatprep.subr.mxu0 0.0
        %1582 = vmatpush1.msra.mxu0 %v842
        %1583 = vmatprep.subr.mxu0 0.0
        %1584 = vmatpush1.msra.mxu0 %v843
        %1585 = vmatprep.subr.mxu0 0.0
        %1586 = vmatpush1.msra.mxu0 %v844
        %1587 = vmatprep.subr.mxu0 0.0
        %1588 = vmatpush1.msra.mxu0 %v845
        %1589 = vmatprep.subr.mxu0 0.0
        %1590 = vmatpush1.msra.mxu0 %v846
        %1591 = vmatprep.subr.mxu0 0.0
        %1592 = vmatpush1.msra.mxu0 %v847
        %1593 = vmatprep.subr.mxu0 0.0
        %1594 = vmatpush1.msra.mxu0 %v848
        %1595 = vmatprep.subr.mxu0 0.0
        %1596 = vmatpush1.msra.mxu0 %v849
        %1597 = vmatprep.subr.mxu0 0.0
        %1598 = vmatpush1.msra.mxu0 %v850
        %1599 = vmatprep.subr.mxu0 0.0
        %1600 = vmatpush1.msra.mxu0 %v851
        %1601 = vmatprep.subr.mxu0 0.0
        %1602 = vmatpush1.msra.mxu0 %v852
        %1603 = vmatprep.subr.mxu0 0.0
        %1604 = vmatpush1.msra.mxu0 %v853
        %1605 = vmatprep.subr.mxu0 0.0
        %1606 = vmatpush1.msra.mxu0 %v854
        %1607 = vmatprep.subr.mxu0 0.0
        %1608 = vmatpush1.msra.mxu0 %v855
        %1609 = vmatprep.subr.mxu0 0.0
        %1610 = vmatpush1.msra.mxu0 %v856
        %1611 = vmatprep.subr.mxu0 0.0
        %1612 = vmatpush1.msra.mxu0 %v857
        %1613 = vmatprep.subr.mxu0 0.0
        %1614 = vmatpush1.msra.mxu0 %v858
        %1615 = vmatprep.subr.mxu0 0.0
        %1616 = vmatpush1.msra.mxu0 %v859
        %1617 = vmatprep.subr.mxu0 0.0
        %1618 = vmatpush1.msra.mxu0 %v860
        %1619 = vmatprep.subr.mxu0 0.0
        %1620 = vmatpush1.msra.mxu0 %v861
        %1621 = vmatprep.subr.mxu0 0.0
        %1622 = vmatpush1.msra.mxu0 %v862
        %1623 = vmatprep.subr.mxu0 0.0
        %1624 = vmatpush1.msra.mxu0 %v863
        %1625 = vmatprep.subr.mxu0 0.0
        %1626 = vmatpush1.msra.mxu0 %v864
        %1627 = vmatprep.mubr.f32.mxu0 %v490
        %1628 = vmatmul.mubr.f32.gmra.mrb[0].mxu0 %v381
        %v1629 = vpop.f32.mrb[0].mxu0
        %v1630 = vadd.f32 %v1405, %v1629
        %v1631 = vpop.f32.mrb[0].mxu0
        %1632 = vmatprep.mubr.f32.mxu0 %v492
        %1633 = vmatmul.mubr.f32.gmra.mrb[0].mxu0 %v382
        %v1634 = vpop.f32.mrb[0].mxu0
        %v1635 = vadd.f32 %v1410, %v1634
        %v1636 = vpop.f32.mrb[0].mxu0
        %1637 = vmatprep.mubr.f32.mxu0 %v495
        %1638 = vmatmul.mubr.f32.gmra.mrb[0].mxu0 %v384
        %v1639 = vpop.f32.mrb[0].mxu0
        %v1640 = vadd.f32 %v1415, %v1639
        %v1641 = vpop.f32.mrb[0].mxu0
        %1642 = vmatprep.mubr.f32.mxu0 %v497
        %1643 = vmatmul.mubr.f32.gmra.mrb[0].mxu0 %v385
        %v1644 = vpop.f32.mrb[0].mxu0
        %v1645 = vadd.f32 %v1420, %v1644
        %v1646 = vpop.f32.mrb[0].mxu0
        %1647 = vmatprep.mubr.f32.mxu0 %v500
        %1648 = vmatmul.mubr.f32.gmra.mrb[0].mxu0 %v387
        %v1649 = vpop.f32.mrb[0].mxu0
        %v1650 = vadd.f32 %v1425, %v1649
        %v1651 = vpop.f32.mrb[0].mxu0
        %1652 = vmatprep.mubr.f32.mxu0 %v502
        %1653 = vmatmul.mubr.f32.gmra.mrb[0].mxu0 %v388
        %v1654 = vpop.f32.mrb[0].mxu0
        %v1655 = vadd.f32 %v1430, %v1654
        %v1656 = vpop.f32.mrb[0].mxu0
        %1657 = vmatprep.mubr.f32.mxu0 %v505
        %1658 = vmatmul.mubr.f32.gmra.mrb[0].mxu0 %v390
        %v1659 = vpop.f32.mrb[0].mxu0
        %v1660 = vadd.f32 %v1435, %v1659
        %v1661 = vpop.f32.mrb[0].mxu0
        %1662 = vmatprep.mubr.f32.mxu0 %v507
        %1663 = vmatmul.mubr.f32.gmra.mrb[0].mxu0 %v391
        %v1664 = vpop.f32.mrb[0].mxu0
        %v1665 = vadd.f32 %v1440, %v1664
        %v1666 = vpop.f32.mrb[0].mxu0
        %1667 = vmatprep.mubr.f32.mxu0 %v510
        %1668 = vmatmul.mubr.f32.gmra.mrb[0].mxu0 %v393
        %v1669 = vpop.f32.mrb[0].mxu0
        %v1670 = vadd.f32 %v1445, %v1669
        %v1671 = vpop.f32.mrb[0].mxu0
        %1672 = vmatprep.mubr.f32.mxu0 %v512
        %1673 = vmatmul.mubr.f32.gmra.mrb[0].mxu0 %v394
        %v1674 = vpop.f32.mrb[0].mxu0
        %v1675 = vadd.f32 %v1450, %v1674
        %v1676 = vpop.f32.mrb[0].mxu0
        %1677 = vmatprep.mubr.f32.mxu0 %v515
        %1678 = vmatmul.mubr.f32.gmra.mrb[0].mxu0 %v396
        %v1679 = vpop.f32.mrb[0].mxu0
        %v1680 = vadd.f32 %v1455, %v1679
        %v1681 = vpop.f32.mrb[0].mxu0
        %1682 = vmatprep.mubr.f32.mxu0 %v517
        %1683 = vmatmul.mubr.f32.gmra.mrb[0].mxu0 %v397
        %v1684 = vpop.f32.mrb[0].mxu0
        %v1685 = vadd.f32 %v1460, %v1684
        %v1686 = vpop.f32.mrb[0].mxu0
        %1687 = vmatprep.mubr.f32.mxu0 %v520
        %1688 = vmatmul.mubr.f32.gmra.mrb[0].mxu0 %v399
        %v1689 = vpop.f32.mrb[0].mxu0
        %v1690 = vadd.f32 %v1465, %v1689
        %v1691 = vpop.f32.mrb[0].mxu0
        %1692 = vmatprep.mubr.f32.mxu0 %v522
        %1693 = vmatmul.mubr.f32.gmra.mrb[0].mxu0 %v400
        %v1694 = vpop.f32.mrb[0].mxu0
        %v1695 = vadd.f32 %v1470, %v1694
        %v1696 = vpop.f32.mrb[0].mxu0
        %1697 = vmatprep.mubr.f32.mxu0 %v525
        %1698 = vmatmul.mubr.f32.gmra.mrb[0].mxu0 %v402
        %v1699 = vpop.f32.mrb[0].mxu0
        %v1700 = vadd.f32 %v1475, %v1699
        %v1701 = vpop.f32.mrb[0].mxu0
        %1702 = vmatprep.mubr.f32.mxu0 %v527
        %1703 = vmatmul.mubr.f32.gmra.mrb[0].mxu0 %v403
        %v1704 = vpop.f32.mrb[0].mxu0
        %v1705 = vadd.f32 %v1480, %v1704
        %v1706 = vpop.f32.mrb[0].mxu0
        %1707 = vmatprep.mubr.f32.mxu0 %v530
        %1708 = vmatmul.mubr.f32.gmra.mrb[0].mxu0 %v405
        %v1709 = vpop.f32.mrb[0].mxu0
        %v1710 = vadd.f32 %v1485, %v1709
        %v1711 = vpop.f32.mrb[0].mxu0
        %1712 = vmatprep.mubr.f32.mxu0 %v532
        %1713 = vmatmul.mubr.f32.gmra.mrb[0].mxu0 %v406
        %v1714 = vpop.f32.mrb[0].mxu0
        %v1715 = vadd.f32 %v1490, %v1714
        %v1716 = vpop.f32.mrb[0].mxu0
        %1717 = vmatprep.mubr.f32.mxu0 %v535
        %1718 = vmatmul.mubr.f32.gmra.mrb[0].mxu0 %v408
        %v1719 = vpop.f32.mrb[0].mxu0
        %v1720 = vadd.f32 %v1495, %v1719
        %v1721 = vpop.f32.mrb[0].mxu0
        %1722 = vmatprep.mubr.f32.mxu0 %v537
        %1723 = vmatmul.mubr.f32.gmra.mrb[0].mxu0 %v409
        %v1724 = vpop.f32.mrb[0].mxu0
        %v1725 = vadd.f32 %v1500, %v1724
        %v1726 = vpop.f32.mrb[0].mxu0
        %1727 = vmatprep.mubr.f32.mxu0 %v540
        %1728 = vmatmul.mubr.f32.gmra.mrb[0].mxu0 %v411
        %v1729 = vpop.f32.mrb[0].mxu0
        %v1730 = vadd.f32 %v1505, %v1729
        %v1731 = vpop.f32.mrb[0].mxu0
        %1732 = vmatprep.mubr.f32.mxu0 %v542
        %1733 = vmatmul.mubr.f32.gmra.mrb[0].mxu0 %v412
        %v1734 = vpop.f32.mrb[0].mxu0
        %v1735 = vadd.f32 %v1510, %v1734
        %v1736 = vpop.f32.mrb[0].mxu0
        %1737 = vmatprep.mubr.f32.mxu0 %v545
        %1738 = vmatmul.mubr.f32.gmra.mrb[0].mxu0 %v414
        %v1739 = vpop.f32.mrb[0].mxu0
        %v1740 = vadd.f32 %v1515, %v1739
        %v1741 = vpop.f32.mrb[0].mxu0
        %1742 = vmatprep.mubr.f32.mxu0 %v547
        %1743 = vmatmul.mubr.f32.gmra.mrb[0].mxu0 %v415
        %v1744 = vpop.f32.mrb[0].mxu0
        %v1745 = vadd.f32 %v1520, %v1744
        %v1746 = vpop.f32.mrb[0].mxu0
        %1747 = vmatprep.mubr.f32.mxu0 %v550
        %1748 = vmatmul.mubr.f32.gmra.mrb[0].mxu0 %v417
        %v1749 = vpop.f32.mrb[0].mxu0
        %v1750 = vadd.f32 %v1525, %v1749
        %v1751 = vpop.f32.mrb[0].mxu0
        %1752 = vmatprep.mubr.f32.mxu0 %v552
        %1753 = vmatmul.mubr.f32.gmra.mrb[0].mxu0 %v418
        %v1754 = vpop.f32.mrb[0].mxu0
        %v1755 = vadd.f32 %v1530, %v1754
        %v1756 = vpop.f32.mrb[0].mxu0
        %1757 = vmatprep.mubr.f32.mxu0 %v555
        %1758 = vmatmul.mubr.f32.gmra.mrb[0].mxu0 %v420
        %v1759 = vpop.f32.mrb[0].mxu0
        %v1760 = vadd.f32 %v1535, %v1759
        %v1761 = vpop.f32.mrb[0].mxu0
        %1762 = vmatprep.mubr.f32.mxu0 %v557
        %1763 = vmatmul.mubr.f32.gmra.mrb[0].mxu0 %v421
        %v1764 = vpop.f32.mrb[0].mxu0
        %v1765 = vadd.f32 %v1540, %v1764
        %v1766 = vpop.f32.mrb[0].mxu0
        %1767 = vmatprep.mubr.f32.mxu0 %v708
        %1768 = vmatmul.mubr.f32.gmra.mrb[0].mxu0 %v423
        %v1769 = vpop.f32.mrb[0].mxu0
        %v1770 = vadd.f32 %v1545, %v1769
        %v1771 = vpop.f32.mrb[0].mxu0
        %1772 = vmatprep.mubr.f32.mxu0 %v710
        %1773 = vmatmul.mubr.f32.gmra.mrb[0].mxu0 %v424
        %v1774 = vpop.f32.mrb[0].mxu0
        %v1775 = vadd.f32 %v1550, %v1774
        %v1776 = vpop.f32.mrb[0].mxu0
        %1777 = vmatprep.mubr.f32.mxu0 %v725
        %1778 = vmatmul.mubr.f32.gmra.mrb[0].mxu0 %v426
        %v1779 = vpop.f32.mrb[0].mxu0
        %v1780 = vadd.f32 %v1555, %v1779
        %v1781 = vpop.f32.mrb[0].mxu0
        %1782 = vmatprep.mubr.f32.mxu0 %v727
        %1783 = vmatmul.mubr.f32.gmra.mrb[0].mxu0 %v427
        %v1784 = vpop.f32.mrb[0].mxu0
        %v1785 = vadd.f32 %v1560, %v1784
        %v1786 = vpop.f32.mrb[0].mxu0
        %1787 = vdwg.mxu0
        %1788 = vmatprep.subr.mxu0 0.0
        %1789 = vmatpush1.msra.mxu0 %v865
        %1790 = vmatprep.subr.mxu0 0.0
        %1791 = vmatpush1.msra.mxu0 %v866
        %1792 = vmatprep.subr.mxu0 0.0
        %1793 = vmatpush1.msra.mxu0 %v867
        %1794 = vmatprep.subr.mxu0 0.0
        %1795 = vmatpush1.msra.mxu0 %v868
        %1796 = vmatprep.subr.mxu0 0.0
        %1797 = vmatpush1.msra.mxu0 %v869
        %1798 = vmatprep.subr.mxu0 0.0
        %1799 = vmatpush1.msra.mxu0 %v870
        %1800 = vmatprep.subr.mxu0 0.0
        %1801 = vmatpush1.msra.mxu0 %v871
        %1802 = vmatprep.subr.mxu0 0.0
        %1803 = vmatpush1.msra.mxu0 %v872
        %1804 = vmatprep.subr.mxu0 0.0
        %1805 = vmatpush1.msra.mxu0 %v873
        %1806 = vmatprep.subr.mxu0 0.0
        %1807 = vmatpush1.msra.mxu0 %v874
        %1808 = vmatprep.subr.mxu0 0.0
        %1809 = vmatpush1.msra.mxu0 %v875
        %1810 = vmatprep.subr.mxu0 0.0
        %1811 = vmatpush1.msra.mxu0 %v876
        %1812 = vmatprep.subr.mxu0 0.0
        %1813 = vmatpush1.msra.mxu0 %v877
        %1814 = vmatprep.subr.mxu0 0.0
        %1815 = vmatpush1.msra.mxu0 %v878
        %1816 = vmatprep.subr.mxu0 0.0
        %1817 = vmatpush1.msra.mxu0 %v879
        %1818 = vmatprep.subr.mxu0 0.0
        %1819 = vmatpush1.msra.mxu0 %v880
        %1820 = vmatprep.subr.mxu0 0.0
        %1821 = vmatpush1.msra.mxu0 0.0
        %1822 = vmatprep.subr.mxu0 0.0
        %1823 = vmatpush1.msra.mxu0 0.0
        %1824 = vmatprep.subr.mxu0 0.0
        %1825 = vmatpush1.msra.mxu0 0.0
        %1826 = vmatprep.subr.mxu0 0.0
        %1827 = vmatpush1.msra.mxu0 0.0
        %1828 = vmatprep.subr.mxu0 0.0
        %1829 = vmatpush1.msra.mxu0 0.0
        %1830 = vmatprep.subr.mxu0 0.0
        %1831 = vmatpush1.msra.mxu0 0.0
        %1832 = vmatprep.subr.mxu0 0.0
        %1833 = vmatpush1.msra.mxu0 0.0
        %1834 = vmatprep.subr.mxu0 0.0
        %1835 = vmatpush1.msra.mxu0 0.0
        %1836 = vmatprep.subr.mxu0 0.0
        %1837 = vmatpush1.msra.mxu0 0.0
        %1838 = vmatprep.subr.mxu0 0.0
        %1839 = vmatpush1.msra.mxu0 0.0
        %1840 = vmatprep.subr.mxu0 0.0
        %1841 = vmatpush1.msra.mxu0 0.0
        %1842 = vmatprep.subr.mxu0 0.0
        %1843 = vmatpush1.msra.mxu0 0.0
        %1844 = vmatprep.subr.mxu0 0.0
        %1845 = vmatpush1.msra.mxu0 0.0
        %1846 = vmatprep.subr.mxu0 0.0
        %1847 = vmatpush1.msra.mxu0 0.0
        %1848 = vmatprep.subr.mxu0 0.0
        %1849 = vmatpush1.msra.mxu0 0.0
        %1850 = vmatprep.subr.mxu0 0.0
        %1851 = vmatpush1.msra.mxu0 0.0
        %1852 = vmatprep.mubr.f32.mxu0 0.0
        %1853 = vmatmul.mubr.f32.gmra.mrb[0].mxu0 %v603
        %v1854 = vpop.f32.mrb[0].mxu0
        %v1855 = vadd.f32 %v1630, %v1854
        %v1856 = vpop.f32.mrb[0].mxu0
        %1857 = vmatprep.mubr.f32.mxu0 0.0
        %1858 = vmatmul.mubr.f32.gmra.mrb[0].mxu0 %v605
        %v1859 = vpop.f32.mrb[0].mxu0
        %v1860 = vadd.f32 %v1635, %v1859
        %v1861 = vpop.f32.mrb[0].mxu0
        %1862 = vmatprep.mubr.f32.mxu0 0.0
        %1863 = vmatmul.mubr.f32.gmra.mrb[0].mxu0 %v608
        %v1864 = vpop.f32.mrb[0].mxu0
        %v1865 = vadd.f32 %v1640, %v1864
        %v1866 = vpop.f32.mrb[0].mxu0
        %1867 = vmatprep.mubr.f32.mxu0 0.0
        %1868 = vmatmul.mubr.f32.gmra.mrb[0].mxu0 %v610
        %v1869 = vpop.f32.mrb[0].mxu0
        %v1870 = vadd.f32 %v1645, %v1869
        %v1871 = vpop.f32.mrb[0].mxu0
        %1872 = vmatprep.mubr.f32.mxu0 0.0
        %1873 = vmatmul.mubr.f32.gmra.mrb[0].mxu0 %v613
        %v1874 = vpop.f32.mrb[0].mxu0
        %v1875 = vadd.f32 %v1650, %v1874
        %v1876 = vpop.f32.mrb[0].mxu0
        %1877 = vmatprep.mubr.f32.mxu0 0.0
        %1878 = vmatmul.mubr.f32.gmra.mrb[0].mxu0 %v615
        %v1879 = vpop.f32.mrb[0].mxu0
        %v1880 = vadd.f32 %v1655, %v1879
        %v1881 = vpop.f32.mrb[0].mxu0
        %1882 = vmatprep.mubr.f32.mxu0 0.0
        %1883 = vmatmul.mubr.f32.gmra.mrb[0].mxu0 %v618
        %v1884 = vpop.f32.mrb[0].mxu0
        %v1885 = vadd.f32 %v1660, %v1884
        %v1886 = vpop.f32.mrb[0].mxu0
        %1887 = vmatprep.mubr.f32.mxu0 0.0
        %1888 = vmatmul.mubr.f32.gmra.mrb[0].mxu0 %v620
        %v1889 = vpop.f32.mrb[0].mxu0
        %v1890 = vadd.f32 %v1665, %v1889
        %v1891 = vpop.f32.mrb[0].mxu0
        %1892 = vmatprep.mubr.f32.mxu0 0.0
        %1893 = vmatmul.mubr.f32.gmra.mrb[0].mxu0 %v623
        %v1894 = vpop.f32.mrb[0].mxu0
        %v1895 = vadd.f32 %v1670, %v1894
        %v1896 = vpop.f32.mrb[0].mxu0
        %1897 = vmatprep.mubr.f32.mxu0 0.0
        %1898 = vmatmul.mubr.f32.gmra.mrb[0].mxu0 %v625
        %v1899 = vpop.f32.mrb[0].mxu0
        %v1900 = vadd.f32 %v1675, %v1899
        %v1901 = vpop.f32.mrb[0].mxu0
        %1902 = vmatprep.mubr.f32.mxu0 0.0
        %1903 = vmatmul.mubr.f32.gmra.mrb[0].mxu0 %v628
        %v1904 = vpop.f32.mrb[0].mxu0
        %v1905 = vadd.f32 %v1680, %v1904
        %v1906 = vpop.f32.mrb[0].mxu0
        %1907 = vmatprep.mubr.f32.mxu0 0.0
        %1908 = vmatmul.mubr.f32.gmra.mrb[0].mxu0 %v630
        %v1909 = vpop.f32.mrb[0].mxu0
        %v1910 = vadd.f32 %v1685, %v1909
        %v1911 = vpop.f32.mrb[0].mxu0
        %1912 = vmatprep.mubr.f32.mxu0 0.0
        %1913 = vmatmul.mubr.f32.gmra.mrb[0].mxu0 %v633
        %v1914 = vpop.f32.mrb[0].mxu0
        %v1915 = vadd.f32 %v1690, %v1914
        %v1916 = vpop.f32.mrb[0].mxu0
        %1917 = vmatprep.mubr.f32.mxu0 0.0
        %1918 = vmatmul.mubr.f32.gmra.mrb[0].mxu0 %v635
        %v1919 = vpop.f32.mrb[0].mxu0
        %v1920 = vadd.f32 %v1695, %v1919
        %v1921 = vpop.f32.mrb[0].mxu0
        %1922 = vmatprep.mubr.f32.mxu0 0.0
        %1923 = vmatmul.mubr.f32.gmra.mrb[0].mxu0 %v638
        %v1924 = vpop.f32.mrb[0].mxu0
        %v1925 = vadd.f32 %v1700, %v1924
        %v1926 = vpop.f32.mrb[0].mxu0
        %1927 = vmatprep.mubr.f32.mxu0 0.0
        %1928 = vmatmul.mubr.f32.gmra.mrb[0].mxu0 %v640
        %v1929 = vpop.f32.mrb[0].mxu0
        %v1930 = vadd.f32 %v1705, %v1929
        %v1931 = vpop.f32.mrb[0].mxu0
        %1932 = vmatprep.mubr.f32.mxu0 0.0
        %1933 = vmatmul.mubr.f32.gmra.mrb[0].mxu0 %v643
        %v1934 = vpop.f32.mrb[0].mxu0
        %v1935 = vadd.f32 %v1710, %v1934
        %v1936 = vpop.f32.mrb[0].mxu0
        %1937 = vmatprep.mubr.f32.mxu0 0.0
        %1938 = vmatmul.mubr.f32.gmra.mrb[0].mxu0 %v645
        %v1939 = vpop.f32.mrb[0].mxu0
        %v1940 = vadd.f32 %v1715, %v1939
        %v1941 = vpop.f32.mrb[0].mxu0
        %1942 = vmatprep.mubr.f32.mxu0 0.0
        %1943 = vmatmul.mubr.f32.gmra.mrb[0].mxu0 %v648
        %v1944 = vpop.f32.mrb[0].mxu0
        %v1945 = vadd.f32 %v1720, %v1944
        %v1946 = vpop.f32.mrb[0].mxu0
        %1947 = vmatprep.mubr.f32.mxu0 0.0
        %1948 = vmatmul.mubr.f32.gmra.mrb[0].mxu0 %v650
        %v1949 = vpop.f32.mrb[0].mxu0
        %v1950 = vadd.f32 %v1725, %v1949
        %v1951 = vpop.f32.mrb[0].mxu0
        %1952 = vmatprep.mubr.f32.mxu0 0.0
        %1953 = vmatmul.mubr.f32.gmra.mrb[0].mxu0 %v653
        %v1954 = vpop.f32.mrb[0].mxu0
        %v1955 = vadd.f32 %v1730, %v1954
        %v1956 = vpop.f32.mrb[0].mxu0
        %1957 = vmatprep.mubr.f32.mxu0 0.0
        %1958 = vmatmul.mubr.f32.gmra.mrb[0].mxu0 %v655
        %v1959 = vpop.f32.mrb[0].mxu0
        %v1960 = vadd.f32 %v1735, %v1959
        %v1961 = vpop.f32.mrb[0].mxu0
        %1962 = vmatprep.mubr.f32.mxu0 0.0
        %1963 = vmatmul.mubr.f32.gmra.mrb[0].mxu0 %v658
        %v1964 = vpop.f32.mrb[0].mxu0
        %v1965 = vadd.f32 %v1740, %v1964
        %v1966 = vpop.f32.mrb[0].mxu0
        %1967 = vmatprep.mubr.f32.mxu0 0.0
        %1968 = vmatmul.mubr.f32.gmra.mrb[0].mxu0 %v660
        %v1969 = vpop.f32.mrb[0].mxu0
        %v1970 = vadd.f32 %v1745, %v1969
        %v1971 = vpop.f32.mrb[0].mxu0
        %1972 = vmatprep.mubr.f32.mxu0 0.0
        %1973 = vmatmul.mubr.f32.gmra.mrb[0].mxu0 %v663
        %v1974 = vpop.f32.mrb[0].mxu0
        %v1975 = vadd.f32 %v1750, %v1974
        %v1976 = vpop.f32.mrb[0].mxu0
        %1977 = vmatprep.mubr.f32.mxu0 0.0
        %1978 = vmatmul.mubr.f32.gmra.mrb[0].mxu0 %v665
        %v1979 = vpop.f32.mrb[0].mxu0
        %v1980 = vadd.f32 %v1755, %v1979
        %v1981 = vpop.f32.mrb[0].mxu0
        %1982 = vmatprep.mubr.f32.mxu0 0.0
        %1983 = vmatmul.mubr.f32.gmra.mrb[0].mxu0 %v668
        %v1984 = vpop.f32.mrb[0].mxu0
        %v1985 = vadd.f32 %v1760, %v1984
        %v1986 = vpop.f32.mrb[0].mxu0
        %1987 = vmatprep.mubr.f32.mxu0 0.0
        %1988 = vmatmul.mubr.f32.gmra.mrb[0].mxu0 %v670
        %v1989 = vpop.f32.mrb[0].mxu0
        %v1990 = vadd.f32 %v1765, %v1989
        %v1991 = vpop.f32.mrb[0].mxu0
        %1992 = vmatprep.mubr.f32.mxu0 0.0
        %1993 = vmatmul.mubr.f32.gmra.mrb[0].mxu0 %v715
        %v1994 = vpop.f32.mrb[0].mxu0
        %v1995 = vadd.f32 %v1770, %v1994
        %v1996 = vpop.f32.mrb[0].mxu0
        %1997 = vmatprep.mubr.f32.mxu0 0.0
        %1998 = vmatmul.mubr.f32.gmra.mrb[0].mxu0 %v717
        %v1999 = vpop.f32.mrb[0].mxu0
        %v2000 = vadd.f32 %v1775, %v1999
        %v2001 = vpop.f32.mrb[0].mxu0
        %2002 = vmatprep.mubr.f32.mxu0 0.0
        %2003 = vmatmul.mubr.f32.gmra.mrb[0].mxu0 %v732
        %v2004 = vpop.f32.mrb[0].mxu0
        %v2005 = vadd.f32 %v1780, %v2004
        %v2006 = vpop.f32.mrb[0].mxu0
        %2007 = vmatprep.mubr.f32.mxu0 0.0
        %2008 = vmatmul.mubr.f32.gmra.mrb[0].mxu0 %v734
        %v2009 = vpop.f32.mrb[0].mxu0
        %v2010 = vadd.f32 %v1785, %v2009
        %v2011 = vpop.f32.mrb[0].mxu0
        %2012 = vdwg.mxu0
        %p2013 = scmp.eq.s32.totalorder %s25, 0
        %p2014 = scmp.eq.s32.totalorder %s26, 0
        %p2015 = pnand %p2013, %p2014
        %p2016 = pneg %p2015
        %p2017 = scmp.eq.s32.totalorder %s27, 0
        %p2018 = pnand %p2016, %p2017
        %p2019 = pneg %p2018
        // Predicated region
        $region45: #{tpu_custom_call.1} parent=43 // pred_check
          _
        $region46: #{tpu_custom_call.1} parent=43 // pred_check_branch
          %2021 = sbr.rel (%p2018) target = $region48
        $region47: #{tpu_custom_call.1} parent=43 // pred_region
          %2022 = vst [vmem:[#allocation2] sm:$0x1] 0.0
          %2023 = vst [vmem:[#allocation3] sm:$0x1] 0.0
        $region48: #{tpu_custom_call.1} parent=43 // pred_fallthru
          _
        // Predicated region
        $region49: #{tpu_custom_call.1} parent=43 // pred_check
          %p2024 = pneg %p2013
        $region50: #{tpu_custom_call.1} parent=43 // pred_check_branch
          %2026 = sbr.rel (%p2024) target = $region52
        $region51: #{tpu_custom_call.1} parent=43 // pred_region
          %v2027 = vld [vmem:[#allocation2] sm:$0x1]
          %v2028 = vadd.f32 %v1855, %v1860
          %v2029 = vadd.f32 %v2028, %v1865
          %v2030 = vadd.f32 %v2029, %v1870
          %v2031 = vadd.f32 %v2030, %v1875
          %v2032 = vadd.f32 %v2031, %v1880
          %v2033 = vadd.f32 %v2032, %v1885
          %v2034 = vadd.f32 %v2033, %v1890
          %v2035 = vadd.f32 %v2034, %v1895
          %v2036 = vadd.f32 %v2035, %v1900
          %v2037 = vadd.f32 %v2036, %v1905
          %v2038 = vadd.f32 %v2037, %v1910
          %v2039 = vadd.f32 %v2038, %v1915
          %v2040 = vadd.f32 %v2039, %v1920
          %v2041 = vadd.f32 %v2040, %v1925
          %v2042 = vadd.f32 %v2041, %v1930
          %v2043 = vadd.f32 %v2042, %v1935
          %v2044 = vadd.f32 %v2043, %v1940
          %v2045 = vadd.f32 %v2044, %v1945
          %v2046 = vadd.f32 %v2045, %v1950
          %v2047 = vadd.f32 %v2046, %v1955
          %v2048 = vadd.f32 %v2047, %v1960
          %v2049 = vadd.f32 %v2048, %v1965
          %v2050 = vadd.f32 %v2049, %v1970
          %v2051 = vadd.f32 %v2050, %v1975
          %v2052 = vadd.f32 %v2051, %v1980
          %v2053 = vadd.f32 %v2052, %v1985
          %v2054 = vadd.f32 %v2053, %v1990
          %v2055 = vadd.f32 %v2054, %v1995
          %v2056 = vadd.f32 %v2055, %v2000
          %v2057 = vadd.f32 %v2056, %v2005
          %v2058 = vadd.f32 %v2057, %v2010
          %v2059 = vrot.slane %v2058, 4
          %v2060 = vadd.f32 %v2058, %v2059
          %v2061 = vrot.slane %v2060, 2
          %v2062 = vadd.f32 %v2060, %v2061
          %v2063 = vrot.slane %v2062, 1
          %v2064 = vadd.f32 %v2062, %v2063
          %v2065 = vadd.f32 %v2027, %v2064
          %2066 = vst [vmem:[#allocation2] sm:$0x1] %v2065
          %v2067 = vld [vmem:[#allocation3] sm:$0x1]
          %v2068 = vmul.f32 %v1855, %v1855
          %v2069 = vmul.f32 %v1860, %v1860
          %v2070 = vmul.f32 %v1865, %v1865
          %v2071 = vmul.f32 %v1870, %v1870
          %v2072 = vmul.f32 %v1875, %v1875
          %v2073 = vmul.f32 %v1880, %v1880
          %v2074 = vmul.f32 %v1885, %v1885
          %v2075 = vmul.f32 %v1890, %v1890
          %v2076 = vmul.f32 %v1895, %v1895
          %v2077 = vmul.f32 %v1900, %v1900
          %v2078 = vmul.f32 %v1905, %v1905
          %v2079 = vmul.f32 %v1910, %v1910
          %v2080 = vmul.f32 %v1915, %v1915
          %v2081 = vmul.f32 %v1920, %v1920
          %v2082 = vmul.f32 %v1925, %v1925
          %v2083 = vmul.f32 %v1930, %v1930
          %v2084 = vmul.f32 %v1935, %v1935
          %v2085 = vmul.f32 %v1940, %v1940
          %v2086 = vmul.f32 %v1945, %v1945
          %v2087 = vmul.f32 %v1950, %v1950
          %v2088 = vmul.f32 %v1955, %v1955
          %v2089 = vmul.f32 %v1960, %v1960
          %v2090 = vmul.f32 %v1965, %v1965
          %v2091 = vmul.f32 %v1970, %v1970
          %v2092 = vmul.f32 %v1975, %v1975
          %v2093 = vmul.f32 %v1980, %v1980
          %v2094 = vmul.f32 %v1985, %v1985
          %v2095 = vmul.f32 %v1990, %v1990
          %v2096 = vmul.f32 %v1995, %v1995
          %v2097 = vmul.f32 %v2000, %v2000
          %v2098 = vmul.f32 %v2005, %v2005
          %v2099 = vmul.f32 %v2010, %v2010
          %v2100 = vadd.f32 %v2068, %v2069
          %v2101 = vadd.f32 %v2100, %v2070
          %v2102 = vadd.f32 %v2101, %v2071
          %v2103 = vadd.f32 %v2102, %v2072
          %v2104 = vadd.f32 %v2103, %v2073
          %v2105 = vadd.f32 %v2104, %v2074
          %v2106 = vadd.f32 %v2105, %v2075
          %v2107 = vadd.f32 %v2106, %v2076
          %v2108 = vadd.f32 %v2107, %v2077
          %v2109 = vadd.f32 %v2108, %v2078
          %v2110 = vadd.f32 %v2109, %v2079
          %v2111 = vadd.f32 %v2110, %v2080
          %v2112 = vadd.f32 %v2111, %v2081
          %v2113 = vadd.f32 %v2112, %v2082
          %v2114 = vadd.f32 %v2113, %v2083
          %v2115 = vadd.f32 %v2114, %v2084
          %v2116 = vadd.f32 %v2115, %v2085
          %v2117 = vadd.f32 %v2116, %v2086
          %v2118 = vadd.f32 %v2117, %v2087
          %v2119 = vadd.f32 %v2118, %v2088
          %v2120 = vadd.f32 %v2119, %v2089
          %v2121 = vadd.f32 %v2120, %v2090
          %v2122 = vadd.f32 %v2121, %v2091
          %v2123 = vadd.f32 %v2122, %v2092
          %v2124 = vadd.f32 %v2123, %v2093
          %v2125 = vadd.f32 %v2124, %v2094
          %v2126 = vadd.f32 %v2125, %v2095
          %v2127 = vadd.f32 %v2126, %v2096
          %v2128 = vadd.f32 %v2127, %v2097
          %v2129 = vadd.f32 %v2128, %v2098
          %v2130 = vadd.f32 %v2129, %v2099
          %v2131 = vrot.slane %v2130, 4
          %v2132 = vadd.f32 %v2130, %v2131
          %v2133 = vrot.slane %v2132, 2
          %v2134 = vadd.f32 %v2132, %v2133
          %v2135 = vrot.slane %v2134, 1
          %v2136 = vadd.f32 %v2134, %v2135
          %v2137 = vadd.f32 %v2067, %v2136
          %2138 = vst [vmem:[#allocation3] sm:$0x1] %v2137
        $region52: #{tpu_custom_call.1} parent=43 // pred_fallthru
          _
        %p2139 = scmp.eq.s32.totalorder %s25, 1
        // Predicated region
        $region53: #{tpu_custom_call.1} parent=43 // pred_check
          %p2140 = pneg %p2139
        $region54: #{tpu_custom_call.1} parent=43 // pred_check_branch
          %2142 = sbr.rel (%p2140) target = $region56
        $region55: #{tpu_custom_call.1} parent=43 // pred_region
          %v2143 = vld [vmem:[#allocation2] sm:$0x1]
          %v2144 = vmul.f32 %v2143, 0.001953125
          %v2145 = vld [vmem:[#allocation3] sm:$0x1]
          %v2146 = vmul.f32 %v2145, 0.001953125
          %v2147 = vmul.f32 %v2144, %v2144
          %v2148 = vsub.f32 %v2146, %v2147
          %v2149 = vmax.f32 %v2148, 0.0
          %v2150 = vadd.f32 %v2149, 1e-05
          %v2151 = vrsqrt.pop %v2150
          %v2152 = vld [vmem:[%s4] sm:$0x1]
          %v2153 = vmul.f32 %v2151, %v2152
          %v2154 = vld [vmem:[%s5] sm:$0x1]
          %v2155 = vmul.f32 %v2144, %v2153
          %v2156 = vsub.f32 %v2154, %v2155
          %v2158 = vlaneseq
          %v2159 = vshrl.u32 %v2158, 7
          %v2160 = vsub.s32 0, %v2159
          %v2161 = vrot.slane %v2153, %v2160
          %v2163 = vmul.f32 %v1855, %v2161
          %v2164 = vmul.f32 %v1860, %v2161
          %v2165 = vmul.f32 %v1865, %v2161
          %v2166 = vmul.f32 %v1870, %v2161
          %v2167 = vmul.f32 %v1875, %v2161
          %v2168 = vmul.f32 %v1880, %v2161
          %v2169 = vmul.f32 %v1885, %v2161
          %v2170 = vmul.f32 %v1890, %v2161
          %v2171 = vmul.f32 %v1895, %v2161
          %v2172 = vmul.f32 %v1900, %v2161
          %v2173 = vmul.f32 %v1905, %v2161
          %v2174 = vmul.f32 %v1910, %v2161
          %v2175 = vmul.f32 %v1915, %v2161
          %v2176 = vmul.f32 %v1920, %v2161
          %v2177 = vmul.f32 %v1925, %v2161
          %v2178 = vmul.f32 %v1930, %v2161
          %v2179 = vmul.f32 %v1935, %v2161
          %v2180 = vmul.f32 %v1940, %v2161
          %v2181 = vmul.f32 %v1945, %v2161
          %v2182 = vmul.f32 %v1950, %v2161
          %v2183 = vmul.f32 %v1955, %v2161
          %v2184 = vmul.f32 %v1960, %v2161
          %v2185 = vmul.f32 %v1965, %v2161
          %v2186 = vmul.f32 %v1970, %v2161
          %v2187 = vmul.f32 %v1975, %v2161
          %v2188 = vmul.f32 %v1980, %v2161
          %v2189 = vmul.f32 %v1985, %v2161
          %v2190 = vmul.f32 %v1990, %v2161
          %v2191 = vmul.f32 %v1995, %v2161
          %v2192 = vmul.f32 %v2000, %v2161
          %v2193 = vmul.f32 %v2005, %v2161
          %v2194 = vmul.f32 %v2010, %v2161
          %v2196 = vlaneseq
          %v2197 = vshrl.u32 %v2196, 7
          %v2198 = vsub.s32 0, %v2197
          %v2199 = vrot.slane %v2156, %v2198
          %v2201 = vadd.f32 %v2163, %v2199
          %v2202 = vadd.f32 %v2164, %v2199
          %v2203 = vadd.f32 %v2165, %v2199
          %v2204 = vadd.f32 %v2166, %v2199
          %v2205 = vadd.f32 %v2167, %v2199
          %v2206 = vadd.f32 %v2168, %v2199
          %v2207 = vadd.f32 %v2169, %v2199
          %v2208 = vadd.f32 %v2170, %v2199
          %v2209 = vadd.f32 %v2171, %v2199
          %v2210 = vadd.f32 %v2172, %v2199
          %v2211 = vadd.f32 %v2173, %v2199
          %v2212 = vadd.f32 %v2174, %v2199
          %v2213 = vadd.f32 %v2175, %v2199
          %v2214 = vadd.f32 %v2176, %v2199
          %v2215 = vadd.f32 %v2177, %v2199
          %v2216 = vadd.f32 %v2178, %v2199
          %v2217 = vadd.f32 %v2179, %v2199
          %v2218 = vadd.f32 %v2180, %v2199
          %v2219 = vadd.f32 %v2181, %v2199
          %v2220 = vadd.f32 %v2182, %v2199
          %v2221 = vadd.f32 %v2183, %v2199
          %v2222 = vadd.f32 %v2184, %v2199
          %v2223 = vadd.f32 %v2185, %v2199
          %v2224 = vadd.f32 %v2186, %v2199
          %v2225 = vadd.f32 %v2187, %v2199
          %v2226 = vadd.f32 %v2188, %v2199
          %v2227 = vadd.f32 %v2189, %v2199
          %v2228 = vadd.f32 %v2190, %v2199
          %v2229 = vadd.f32 %v2191, %v2199
          %v2230 = vadd.f32 %v2192, %v2199
          %v2231 = vadd.f32 %v2193, %v2199
          %v2232 = vadd.f32 %v2194, %v2199
          %v2233 = vmax.f32 %v2201, 0.0
          %v2234 = vmax.f32 %v2202, 0.0
          %v2235 = vmax.f32 %v2203, 0.0
          %v2236 = vmax.f32 %v2204, 0.0
          %v2237 = vmax.f32 %v2205, 0.0
          %v2238 = vmax.f32 %v2206, 0.0
          %v2239 = vmax.f32 %v2207, 0.0
          %v2240 = vmax.f32 %v2208, 0.0
          %v2241 = vmax.f32 %v2209, 0.0
          %v2242 = vmax.f32 %v2210, 0.0
          %v2243 = vmax.f32 %v2211, 0.0
          %v2244 = vmax.f32 %v2212, 0.0
          %v2245 = vmax.f32 %v2213, 0.0
          %v2246 = vmax.f32 %v2214, 0.0
          %v2247 = vmax.f32 %v2215, 0.0
          %v2248 = vmax.f32 %v2216, 0.0
          %v2249 = vmax.f32 %v2217, 0.0
          %v2250 = vmax.f32 %v2218, 0.0
          %v2251 = vmax.f32 %v2219, 0.0
          %v2252 = vmax.f32 %v2220, 0.0
          %v2253 = vmax.f32 %v2221, 0.0
          %v2254 = vmax.f32 %v2222, 0.0
          %v2255 = vmax.f32 %v2223, 0.0
          %v2256 = vmax.f32 %v2224, 0.0
          %v2257 = vmax.f32 %v2225, 0.0
          %v2258 = vmax.f32 %v2226, 0.0
          %v2259 = vmax.f32 %v2227, 0.0
          %v2260 = vmax.f32 %v2228, 0.0
          %v2261 = vmax.f32 %v2229, 0.0
          %v2262 = vmax.f32 %v2230, 0.0
          %v2263 = vmax.f32 %v2231, 0.0
          %v2264 = vmax.f32 %v2232, 0.0
          %2265 = vst [vmem:[%s335] sm:$0xff] %v2233
          %2266 = vst [vmem:[%s335 + $0x8] sm:$0xff] %v2234
          %2267 = vst [vmem:[%s335 + $0x10] sm:$0xff] %v2235
          %2268 = vst [vmem:[%s335 + $0x18] sm:$0xff] %v2236
          %2269 = vst [vmem:[%s335 + $0x20] sm:$0xff] %v2237
          %2270 = vst [vmem:[%s335 + $0x28] sm:$0xff] %v2238
          %2271 = vst [vmem:[%s335 + $0x30] sm:$0xff] %v2239
          %2272 = vst [vmem:[%s335 + $0x38] sm:$0xff] %v2240
          %2273 = vst [vmem:[%s335 + $0x40] sm:$0xff] %v2241
          %2274 = vst [vmem:[%s335 + $0x48] sm:$0xff] %v2242
          %2275 = vst [vmem:[%s335 + $0x50] sm:$0xff] %v2243
          %2276 = vst [vmem:[%s335 + $0x58] sm:$0xff] %v2244
          %2277 = vst [vmem:[%s335 + $0x60] sm:$0xff] %v2245
          %2278 = vst [vmem:[%s335 + $0x68] sm:$0xff] %v2246
          %2279 = vst [vmem:[%s335 + $0x70] sm:$0xff] %v2247
          %2280 = vst [vmem:[%s335 + $0x78] sm:$0xff] %v2248
          %2281 = vst [vmem:[%s335 + $0x80] sm:$0xff] %v2249
          %2282 = vst [vmem:[%s335 + $0x88] sm:$0xff] %v2250
          %2283 = vst [vmem:[%s335 + $0x90] sm:$0xff] %v2251
          %2284 = vst [vmem:[%s335 + $0x98] sm:$0xff] %v2252
          %2285 = vst [vmem:[%s335 + $0xa0] sm:$0xff] %v2253
          %2286 = vst [vmem:[%s335 + $0xa8] sm:$0xff] %v2254
          %2287 = vst [vmem:[%s335 + $0xb0] sm:$0xff] %v2255
          %2288 = vst [vmem:[%s335 + $0xb8] sm:$0xff] %v2256
          %2289 = vst [vmem:[%s335 + $0xc0] sm:$0xff] %v2257
          %2290 = vst [vmem:[%s335 + $0xc8] sm:$0xff] %v2258
          %2291 = vst [vmem:[%s335 + $0xd0] sm:$0xff] %v2259
          %2292 = vst [vmem:[%s335 + $0xd8] sm:$0xff] %v2260
          %2293 = vst [vmem:[%s335 + $0xe0] sm:$0xff] %v2261
          %2294 = vst [vmem:[%s335 + $0xe8] sm:$0xff] %v2262
          %2295 = vst [vmem:[%s335 + $0xf0] sm:$0xff] %v2263
          %2296 = vst [vmem:[%s335 + $0xf8] sm:$0xff] %v2264
        $region56: #{tpu_custom_call.1} parent=43 // pred_fallthru
          _
        %s2297 = sand.u32 %s197, 1
        %s2298 = scalar_lea.sflag [#allocation5], %s2297
        %s2299 = sand.u32 %s197, 1
        %s2300 = smul.addr %s2299, 256
        %s2301 = scalar_lea.vmem [#allocation4], %s2300
        // Predicated region
        $region57: #{tpu_custom_call.1} parent=43 // pred_check
          %p2302 = pneg %p207
        $region58: #{tpu_custom_call.1} parent=43 // pred_check_branch
          %2304 = sbr.rel (%p2302) target = $region60
        $region59: #{tpu_custom_call.1} parent=43 // pred_region
          %s2305 = smul.u32 %s26, %s25
          %s2306 = smul.u32 %s27, %s25
          %s2307 = smul.u32 16, %s2306
          %s2309 = ssub.s32 4096, 4096
          %2310 = vsyncadd %s2298, %s2309
          %s2311 = smul.addr %s2307, 2
          %s2312 = smul.addr %s2305, 32
          %s2313 = sadd.s32 %s2311, %s2312
          %s2314 = smul.addr %s2313, 128
          %s2315 = scalar_lea.hbm %s6, %s2314
          %s2316 = sshll.u32 %s2301, 4
          %s2317 = int_to_ptr.vmem [resolvable:$true] %s2316
          %2322 = dma.vmem_to_hbm [thread:$0]  %s2317, 4096, %s2315, %s2298, 128, 128, 8
        $region60: #{tpu_custom_call.1} parent=43 // pred_fallthru
          _
      $region44: #{tpu_custom_call.1} parent=5 // pred_fallthru
        _
      %p2323 = scmp.le.s32.totalorder 2, %s15
      // Predicated region
      $region61: #{tpu_custom_call.1} parent=5 // pred_check
        %p2324 = pneg %p2323
      $region62: #{tpu_custom_call.1} parent=5 // pred_check_branch
        %2326 = sbr.rel (%p2324) target = $region64
      $region63: #{tpu_custom_call.1} parent=5 // pred_region
        %s2327 = ssub.s32 %s15, 2
        // Predicated region
        $region65: #{tpu_custom_call.1} parent=63 // pred_check
          %p2328 = pneg %p213
        $region66: #{tpu_custom_call.1} parent=63 // pred_check_branch
          %2330 = sbr.rel (%p2328) target = $region68
        $region67: #{tpu_custom_call.1} parent=63 // pred_region
          %s2331 = sand.u32 %s198, 1
          %s2332 = scalar_lea.sflag [#allocation5], %s2331
          %s2333 = sand.u32 %s198, 1
          %s2334 = smul.addr %s2333, 256
          %s2335 = scalar_lea.vmem [#allocation4], %s2334
          %2336 = dma.done %s2332, 4096
        $region68: #{tpu_custom_call.1} parent=63 // pred_fallthru
          _
      $region64: #{tpu_custom_call.1} parent=5 // pred_fallthru
        _
    $region6: #{tpu_custom_call.1} parent=1 // loop_footer
      %s19 = sadd.s32 1, %s15
    $region7: #{tpu_custom_call.1} parent=1 // loop_footer_branch
      %14 = sbr.rel target = $region3
    $region8: #{tpu_custom_call.1} parent=1 // loop_exit
      _
    %2337 = vsyncpa [#allocation5], 1
    %s2338 = scalar_lea.sflag [#allocation5], 1
    %2339 = vsyncpa %s2338, 1

</llo_original>
